<compile_context>
chip_gen: v7x
topology: tpu7x:2x2x1
jax: 0.10.0
libtpu: 0.0.40
codegen_flags: <defaults>
</compile_context>

<pallas_src>
import functools

import jax
import jax.numpy as jnp
from jax.experimental import pallas as pl
from jax.experimental.pallas import tpu as pltpu


def _mlp_kernel(x_ref,
                w1_ref, t1_ref,
                w2_ref, t2_ref,
                w3_ref, t3_ref,
                w4_ref, t4_ref,
                w5_ref, b5_ref,
                o_ref):
    """Fused 5-layer MLP: (matmul -> shift -> ReLU) x4 -> final lane-dense row."""
    mm_dtype = w1_ref.dtype    # bf16 (default) or f32
    epi_dtype = t1_ref.dtype   # bf16 on v6e/v7x, f32 on v5e

    def fused_layer(h, w_ref, t_ref):
        # MXU matmul, f32 accumulation.  BN scale is pre-folded into w columns.
        z = jnp.dot(h, w_ref[...], preferred_element_type=jnp.float32)
        z = z.astype(epi_dtype) + t_ref[...]      # folded bias/BN shift
        z = jnp.maximum(z, 0.0)                   # ReLU (Dropout = identity, eval)
        return z.astype(mm_dtype)

    h = x_ref[...]                                # already mm_dtype (cast in wrapper)
    h = fused_layer(h, w1_ref, t1_ref)
    h = fused_layer(h, w2_ref, t2_ref)
    h = fused_layer(h, w3_ref, t3_ref)
    h = fused_layer(h, w4_ref, t4_ref)

    # Final Linear(128, 1): contract w5 (1,128) with h (tile,128) over features.
    # Result is a lane-dense (1, tile) row -> unmasked vst, no N=1 column padding.
    out_row = jax.lax.dot_general(
        w5_ref[...], h,
        dimension_numbers=(((1,), (1,)), ((), ())),
        preferred_element_type=jnp.float32)       # (1, tile)
    o_ref[...] = (out_row + b5_ref[...]).astype(o_ref.dtype)


def _full_spec(shape):
    # Whole-array block; constant block index -> Pallas skips re-DMA per step.
    return pl.BlockSpec(shape, lambda i: tuple(0 for _ in shape))


def _round_up(n, m):
    return ((n + m - 1) // m) * m


def _device_defaults():
    """Per-generation defaults: MXU-height multiple and bf16-epilogue support."""
    kind = jax.devices()[0].device_kind.lower()
    is_v5 = "v5" in kind
    mxu_mult = 128 if is_v5 else 256       # tile multiple for full MXU passes
    bf16_epilogue = not is_v5              # v5e has no bf16 VALU
    return mxu_mult, bf16_epilogue


@functools.partial(
    jax.jit,
    static_argnames=("batch_tile", "use_bf16", "bf16_epilogue", "mxu_mult"))
def _forward_impl(x, params, batch_tile, use_bf16, bf16_epilogue, mxu_mult):
    B, d_in = x.shape
    mm_dtype = jnp.bfloat16 if use_bf16 else jnp.float32
    epi_dtype = jnp.bfloat16 if (use_bf16 and bf16_epilogue) else jnp.float32

    # Tile: multiple of mxu_mult, capped at batch_tile, >= 2 grid steps when possible.
    Bp0 = _round_up(B, mxu_mult)
    half = (Bp0 // 2 // mxu_mult) * mxu_mult
    tile = min(batch_tile, half) if half >= mxu_mult else Bp0
    tile = max(mxu_mult, (tile // mxu_mult) * mxu_mult)
    Bp = _round_up(B, tile)

    if Bp != B:
        x = jnp.pad(x, ((0, Bp - B), (0, 0)))
    x = x.astype(mm_dtype)                 # halve the batch-scaling HBM read

    # Fold BN scale into weight columns in f32, then cast once to the MXU dtype.
    ws, ts = [], []
    for i in range(1, 5):
        ws.append((params[f"w{i}"] * params[f"s{i}"]).astype(mm_dtype))
        ts.append(params[f"t{i}"].astype(epi_dtype))
    w1, w2, w3, w4 = ws
    t1, t2, t3, t4 = ts
    w5 = params["w5"].astype(mm_dtype)     # (1, 128)
    b5 = params["b5"].astype(jnp.float32)  # (1, 1)

    in_specs = [
        pl.BlockSpec((tile, d_in), lambda i: (i, 0)),   # x: tiled over batch
        _full_spec(w1.shape), _full_spec(t1.shape),
        _full_spec(w2.shape), _full_spec(t2.shape),
        _full_spec(w3.shape), _full_spec(t3.shape),
        _full_spec(w4.shape), _full_spec(t4.shape),
        _full_spec(w5.shape), _full_spec(b5.shape),
    ]
    # Lane-dense transposed output: (1, Bp), tiled as (1, tile).
    out_spec = pl.BlockSpec((1, tile), lambda i: (0, i))

    dims = (d_in, 512, 256, 256, 128, 1)
    flops = 2 * Bp * sum(a * b for a, b in zip(dims[:-1], dims[1:]))
    weight_bytes = sum(
        v.size * v.dtype.itemsize
        for v in (w1, t1, w2, t2, w3, t3, w4, t4, w5, b5))
    bytes_accessed = x.size * x.dtype.itemsize + weight_bytes + Bp * 4
    cost = pl.CostEstimate(flops=flops, transcendentals=0,
                           bytes_accessed=bytes_accessed)

    out_t = pl.pallas_call(
        _mlp_kernel,
        out_shape=jax.ShapeDtypeStruct((1, Bp), jnp.float32),
        grid_spec=pltpu.PrefetchScalarGridSpec(
            num_scalar_prefetch=0,
            grid=(Bp // tile,),
            in_specs=in_specs,
            out_specs=out_spec,
        ),
        compiler_params=pltpu.CompilerParams(
            dimension_semantics=("parallel",),   # megacore / dual-TC sharding
        ),
        cost_estimate=cost,
    )(x, w1, t1, w2, t2, w3, t3, w4, t4, w5, b5)

    # (1, Bp) -> (Bp, 1) is a free (metadata) reshape outside the kernel.
    return out_t.reshape(Bp, 1)[:B]


def cuda_mlp_forward(x, params, batch_tile=1024, use_bf16=True):
    """x: (B, input_size) float32.  params: dict of (folded) parameters."""
    mxu_mult, bf16_epilogue = _device_defaults()
    return _forward_impl(x, params, batch_tile, use_bf16, bf16_epilogue, mxu_mult)


def init_params(key, input_size):
    """PyTorch-style init, with eval-mode BatchNorm folded into scale/shift.

    Hidden-layer weights stored as (in_dim, out_dim); the final Linear(128,1)
    weight is stored as a (1, 128) row (== PyTorch Linear.weight shape) so the
    kernel can emit a lane-dense transposed output. BatchNorm defaults:
    gamma=1, beta=0, running_mean=0, running_var=1, eps=1e-5.
    """
    dims = [input_size, 512, 256, 256, 128, 1]
    eps = 1e-5
    params = {}
    keys = jax.random.split(key, 2 * (len(dims) - 1))
    for li in range(len(dims) - 1):
        din, dout = dims[li], dims[li + 1]
        bound = 1.0 / (float(din) ** 0.5)
        w = jax.random.uniform(keys[2 * li], (din, dout), jnp.float32, -bound, bound)
        b = jax.random.uniform(keys[2 * li + 1], (1, dout), jnp.float32, -bound, bound)
        idx = li + 1
        if li < 4:
            gamma = jnp.ones((1, dout), jnp.float32)
            beta = jnp.zeros((1, dout), jnp.float32)
            running_mean = jnp.zeros((1, dout), jnp.float32)
            running_var = jnp.ones((1, dout), jnp.float32)
            s = gamma / jnp.sqrt(running_var + eps)
            t = (b - running_mean) * s + beta
            params[f"w{idx}"] = w
            params[f"s{idx}"] = s
            params[f"t{idx}"] = t
        else:
            params["w5"] = w.T      # (1, 128)
            params["b5"] = b        # (1, 1)
    return params


def reference_forward(x, params, mm_dtype=jnp.bfloat16, epi_dtype=jnp.bfloat16):
    """Plain-JAX reference of the same eval-mode forward (matched dtype path)."""
    h = x.astype(mm_dtype)
    for i in range(1, 5):
        w = (params[f"w{i}"] * params[f"s{i}"]).astype(mm_dtype)
        t = params[f"t{i}"].astype(epi_dtype)
        z = jnp.dot(h, w, preferred_element_type=jnp.float32)
        z = z.astype(epi_dtype) + t
        h = jnp.maximum(z, 0.0).astype(mm_dtype)
    w5 = params["w5"].astype(mm_dtype)
    return jnp.dot(h, w5.T, preferred_element_type=jnp.float32) + params["b5"]


if __name__ == "__main__":
    key = jax.random.PRNGKey(0)
    k_param, k_x = jax.random.split(key)

    batch, input_size = 512, 32          # auto-tile -> 2 parallel grid steps
    params = init_params(k_param, input_size)
    x = jax.random.normal(k_x, (batch, input_size), jnp.float32)

    out = cuda_mlp_forward(x, params, batch_tile=1024, use_bf16=True)
    out = jax.block_until_ready(out)

    mxu_mult, bf16_epilogue = _device_defaults()
    epi_dtype = jnp.bfloat16 if bf16_epilogue else jnp.float32
    ref = reference_forward(x, params, mm_dtype=jnp.bfloat16, epi_dtype=epi_dtype)

    assert out.shape == (batch, 1)
    assert jnp.allclose(out, ref, atol=2e-3, rtol=2e-3), "mismatch vs reference"

    print("KERNEL_OK")
</pallas_src>

<mosaic_0001>
module attributes {stable_mosaic.version = 11 : i64} {
  func.func @_mlp_kernel(%arg0: i32, %arg1: memref<256x32xbf16, #tpu.memory_space<vmem>>, %arg2: memref<32x512xbf16, #tpu.memory_space<vmem>>, %arg3: memref<1x512xbf16, #tpu.memory_space<vmem>>, %arg4: memref<512x256xbf16, #tpu.memory_space<vmem>>, %arg5: memref<1x256xbf16, #tpu.memory_space<vmem>>, %arg6: memref<256x256xbf16, #tpu.memory_space<vmem>>, %arg7: memref<1x256xbf16, #tpu.memory_space<vmem>>, %arg8: memref<256x128xbf16, #tpu.memory_space<vmem>>, %arg9: memref<1x128xbf16, #tpu.memory_space<vmem>>, %arg10: memref<1x128xbf16, #tpu.memory_space<vmem>>, %arg11: memref<1x1xf32, #tpu.memory_space<vmem>>, %arg12: memref<1x256xf32, #tpu.memory_space<vmem>>) attributes {dimension_semantics = [#tpu.dimension_semantics<parallel>], iteration_bounds = array<i64: 2>, scalar_prefetch = 0 : i64, scratch_operands = 0 : i64, tpu.core_type = #tpu.core_type<tc>, window_params = [{transform_indices = @transform_0, window_bounds = array<i64: 256, 32>}, {pipeline_mode = #tpu.pipeline_mode<synchronous>, transform_indices = @transform_1, window_bounds = array<i64: 32, 512>}, {pipeline_mode = #tpu.pipeline_mode<synchronous>, transform_indices = @transform_2, window_bounds = array<i64: 1, 512>}, {pipeline_mode = #tpu.pipeline_mode<synchronous>, transform_indices = @transform_3, window_bounds = array<i64: 512, 256>}, {pipeline_mode = #tpu.pipeline_mode<synchronous>, transform_indices = @transform_4, window_bounds = array<i64: 1, 256>}, {pipeline_mode = #tpu.pipeline_mode<synchronous>, transform_indices = @transform_5, window_bounds = array<i64: 256, 256>}, {pipeline_mode = #tpu.pipeline_mode<synchronous>, transform_indices = @transform_6, window_bounds = array<i64: 1, 256>}, {pipeline_mode = #tpu.pipeline_mode<synchronous>, transform_indices = @transform_7, window_bounds = array<i64: 256, 128>}, {pipeline_mode = #tpu.pipeline_mode<synchronous>, transform_indices = @transform_8, window_bounds = array<i64: 1, 128>}, {pipeline_mode = #tpu.pipeline_mode<synchronous>, transform_indices = @transform_9, window_bounds = array<i64: 1, 128>}, {pipeline_mode = #tpu.pipeline_mode<synchronous>, transform_indices = @transform_10, window_bounds = array<i64: 1, 1>}, {transform_indices = @transform_11, window_bounds = array<i64: 1, 256>}]} {
    %c0 = arith.constant 0 : index
    %c0_0 = arith.constant 0 : index
    %0 = vector.load %arg1[%c0, %c0_0] : memref<256x32xbf16, #tpu.memory_space<vmem>>, vector<256x32xbf16>
    %c0_1 = arith.constant 0 : index
    %c0_2 = arith.constant 0 : index
    %1 = vector.load %arg2[%c0_1, %c0_2] : memref<32x512xbf16, #tpu.memory_space<vmem>>, vector<32x512xbf16>
    %cst = arith.constant dense<0.000000e+00> : vector<256x512xf32>
    %2 = tpu.matmul %0, %1, %cst {dimension_numbers = #tpu.dot_dimension_numbers<[1], [0], [0], [1], [0, 0, 1, 1], [], []>} : vector<256x32xbf16>, vector<32x512xbf16>, vector<256x512xf32> -> vector<256x512xf32>
    %3 = arith.truncf %2 : vector<256x512xf32> to vector<256x512xbf16>
    %c0_3 = arith.constant 0 : index
    %c0_4 = arith.constant 0 : index
    %4 = vector.load %arg3[%c0_3, %c0_4] : memref<1x512xbf16, #tpu.memory_space<vmem>>, vector<1x512xbf16>
    %5 = vector.broadcast %4 : vector<1x512xbf16> to vector<256x512xbf16>
    %6 = arith.addf %3, %5 : vector<256x512xbf16>
    %cst_5 = arith.constant 0.000000e+00 : bf16
    %7 = vector.broadcast %cst_5 : bf16 to vector<256x512xbf16>
    %8 = arith.maximumf %6, %7 : vector<256x512xbf16>
    %c0_6 = arith.constant 0 : index
    %c0_7 = arith.constant 0 : index
    %9 = vector.load %arg4[%c0_6, %c0_7] : memref<512x256xbf16, #tpu.memory_space<vmem>>, vector<512x256xbf16>
    %cst_8 = arith.constant dense<0.000000e+00> : vector<256x256xf32>
    %10 = tpu.matmul %8, %9, %cst_8 {dimension_numbers = #tpu.dot_dimension_numbers<[1], [0], [0], [1], [0, 0, 1, 1], [], []>} : vector<256x512xbf16>, vector<512x256xbf16>, vector<256x256xf32> -> vector<256x256xf32>
    %11 = arith.truncf %10 : vector<256x256xf32> to vector<256x256xbf16>
    %c0_9 = arith.constant 0 : index
    %c0_10 = arith.constant 0 : index
    %12 = vector.load %arg5[%c0_9, %c0_10] : memref<1x256xbf16, #tpu.memory_space<vmem>>, vector<1x256xbf16>
    %13 = vector.broadcast %12 : vector<1x256xbf16> to vector<256x256xbf16>
    %14 = arith.addf %11, %13 : vector<256x256xbf16>
    %cst_11 = arith.constant 0.000000e+00 : bf16
    %15 = vector.broadcast %cst_11 : bf16 to vector<256x256xbf16>
    %16 = arith.maximumf %14, %15 : vector<256x256xbf16>
    %c0_12 = arith.constant 0 : index
    %c0_13 = arith.constant 0 : index
    %17 = vector.load %arg6[%c0_12, %c0_13] : memref<256x256xbf16, #tpu.memory_space<vmem>>, vector<256x256xbf16>
    %cst_14 = arith.constant dense<0.000000e+00> : vector<256x256xf32>
    %18 = tpu.matmul %16, %17, %cst_14 {dimension_numbers = #tpu.dot_dimension_numbers<[1], [0], [0], [1], [0, 0, 1, 1], [], []>} : vector<256x256xbf16>, vector<256x256xbf16>, vector<256x256xf32> -> vector<256x256xf32>
    %19 = arith.truncf %18 : vector<256x256xf32> to vector<256x256xbf16>
    %c0_15 = arith.constant 0 : index
    %c0_16 = arith.constant 0 : index
    %20 = vector.load %arg7[%c0_15, %c0_16] : memref<1x256xbf16, #tpu.memory_space<vmem>>, vector<1x256xbf16>
    %21 = vector.broadcast %20 : vector<1x256xbf16> to vector<256x256xbf16>
    %22 = arith.addf %19, %21 : vector<256x256xbf16>
    %cst_17 = arith.constant 0.000000e+00 : bf16
    %23 = vector.broadcast %cst_17 : bf16 to vector<256x256xbf16>
    %24 = arith.maximumf %22, %23 : vector<256x256xbf16>
    %c0_18 = arith.constant 0 : index
    %c0_19 = arith.constant 0 : index
    %25 = vector.load %arg8[%c0_18, %c0_19] : memref<256x128xbf16, #tpu.memory_space<vmem>>, vector<256x128xbf16>
    %cst_20 = arith.constant dense<0.000000e+00> : vector<256x128xf32>
    %26 = tpu.matmul %24, %25, %cst_20 {dimension_numbers = #tpu.dot_dimension_numbers<[1], [0], [0], [1], [0, 0, 1, 1], [], []>} : vector<256x256xbf16>, vector<256x128xbf16>, vector<256x128xf32> -> vector<256x128xf32>
    %27 = arith.truncf %26 : vector<256x128xf32> to vector<256x128xbf16>
    %c0_21 = arith.constant 0 : index
    %c0_22 = arith.constant 0 : index
    %28 = vector.load %arg9[%c0_21, %c0_22] : memref<1x128xbf16, #tpu.memory_space<vmem>>, vector<1x128xbf16>
    %29 = vector.broadcast %28 : vector<1x128xbf16> to vector<256x128xbf16>
    %30 = arith.addf %27, %29 : vector<256x128xbf16>
    %cst_23 = arith.constant 0.000000e+00 : bf16
    %31 = vector.broadcast %cst_23 : bf16 to vector<256x128xbf16>
    %32 = arith.maximumf %30, %31 : vector<256x128xbf16>
    %c0_24 = arith.constant 0 : index
    %c0_25 = arith.constant 0 : index
    %33 = vector.load %arg10[%c0_24, %c0_25] : memref<1x128xbf16, #tpu.memory_space<vmem>>, vector<1x128xbf16>
    %cst_26 = arith.constant dense<0.000000e+00> : vector<1x256xf32>
    %34 = tpu.matmul %33, %32, %cst_26 {dimension_numbers = #tpu.dot_dimension_numbers<[1], [1], [0], [0], [0, 0, 1, 0], [], []>} : vector<1x128xbf16>, vector<256x128xbf16>, vector<1x256xf32> -> vector<1x256xf32>
    %c0_27 = arith.constant 0 : index
    %c0_28 = arith.constant 0 : index
    %35 = vector.load %arg11[%c0_27, %c0_28] : memref<1x1xf32, #tpu.memory_space<vmem>>, vector<1x1xf32>
    %36 = vector.broadcast %35 : vector<1x1xf32> to vector<1x256xf32>
    %37 = arith.addf %34, %36 : vector<1x256xf32>
    %c0_29 = arith.constant 0 : index
    %c0_30 = arith.constant 0 : index
    %38 = vector.load %arg12[%c0_29, %c0_30] : memref<1x256xf32, #tpu.memory_space<vmem>>, vector<1x256xf32>
    tpu.vector_store %arg12[%c0_29, %c0_30], %37 {strides = array<i32>} : memref<1x256xf32, #tpu.memory_space<vmem>>, vector<1x256xf32>,
    return
  }
  func.func @transform_0(%arg0: i32) -> (i32, i32) {
    %c0_i32 = arith.constant 0 : i32
    %c0_i32_0 = arith.constant 0 : i32
    return %arg0, %c0_i32 : i32, i32
  }
  func.func @transform_1(%arg0: i32) -> (i32, i32) {
    %c0_i32 = arith.constant 0 : i32
    %c0_i32_0 = arith.constant 0 : i32
    %c0_i32_1 = arith.constant 0 : i32
    return %c0_i32, %c0_i32_0 : i32, i32
  }
  func.func @transform_2(%arg0: i32) -> (i32, i32) {
    %c0_i32 = arith.constant 0 : i32
    %c0_i32_0 = arith.constant 0 : i32
    %c0_i32_1 = arith.constant 0 : i32
    return %c0_i32, %c0_i32_0 : i32, i32
  }
  func.func @transform_3(%arg0: i32) -> (i32, i32) {
    %c0_i32 = arith.constant 0 : i32
    %c0_i32_0 = arith.constant 0 : i32
    %c0_i32_1 = arith.constant 0 : i32
    return %c0_i32, %c0_i32_0 : i32, i32
  }
  func.func @transform_4(%arg0: i32) -> (i32, i32) {
    %c0_i32 = arith.constant 0 : i32
    %c0_i32_0 = arith.constant 0 : i32
    %c0_i32_1 = arith.constant 0 : i32
    return %c0_i32, %c0_i32_0 : i32, i32
  }
  func.func @transform_5(%arg0: i32) -> (i32, i32) {
    %c0_i32 = arith.constant 0 : i32
    %c0_i32_0 = arith.constant 0 : i32
    %c0_i32_1 = arith.constant 0 : i32
    return %c0_i32, %c0_i32_0 : i32, i32
  }
  func.func @transform_6(%arg0: i32) -> (i32, i32) {
    %c0_i32 = arith.constant 0 : i32
    %c0_i32_0 = arith.constant 0 : i32
    %c0_i32_1 = arith.constant 0 : i32
    return %c0_i32, %c0_i32_0 : i32, i32
  }
  func.func @transform_7(%arg0: i32) -> (i32, i32) {
    %c0_i32 = arith.constant 0 : i32
    %c0_i32_0 = arith.constant 0 : i32
    %c0_i32_1 = arith.constant 0 : i32
    return %c0_i32, %c0_i32_0 : i32, i32
  }
  func.func @transform_8(%arg0: i32) -> (i32, i32) {
    %c0_i32 = arith.constant 0 : i32
    %c0_i32_0 = arith.constant 0 : i32
    %c0_i32_1 = arith.constant 0 : i32
    return %c0_i32, %c0_i32_0 : i32, i32
  }
  func.func @transform_9(%arg0: i32) -> (i32, i32) {
    %c0_i32 = arith.constant 0 : i32
    %c0_i32_0 = arith.constant 0 : i32
    %c0_i32_1 = arith.constant 0 : i32
    return %c0_i32, %c0_i32_0 : i32, i32
  }
  func.func @transform_10(%arg0: i32) -> (i32, i32) {
    %c0_i32 = arith.constant 0 : i32
    %c0_i32_0 = arith.constant 0 : i32
    %c0_i32_1 = arith.constant 0 : i32
    return %c0_i32, %c0_i32_0 : i32, i32
  }
  func.func @transform_11(%arg0: i32) -> (i32, i32) {
    %c0_i32 = arith.constant 0 : i32
    %c0_i32_0 = arith.constant 0 : i32
    return %c0_i32, %arg0 : i32, i32
  }
}

</mosaic_0001>

<llo_original>
// kernel: _forward_impl.1
$region0: #{_forward_impl.1}
  #allocation0 [shape = 'u32[]', space=smem, size = 0x4, offset = 0x4, fixed_abs, tag = 'smem constant byte address 0x4 - core index']
  #allocation1 [shape = 'u32[144,128]{1,0:T(1,128)}', space=vmem, size = 0x12000, scoped, tag = 'internal scratch']
  #allocation2 [shape = 'f32[1,1]{1,0:T(1,128)S(1)}', space=vmem, size = 0x200, scoped, tag = 'scoped memory for _forward_impl.1']
  %s0 = inlined_call_operand.vmem [shape: bf16[512,32], index: 0, kind: input, shape index: {}]
  %s1 = inlined_call_operand.vmem [shape: bf16[32,512], index: 1, kind: input, shape index: {}]
  %s2 = inlined_call_operand.vmem [shape: bf16[1,512], index: 2, kind: input, shape index: {}]
  %s3 = inlined_call_operand.vmem [shape: bf16[512,256], index: 3, kind: input, shape index: {}]
  %s4 = inlined_call_operand.vmem [shape: bf16[1,256], index: 4, kind: input, shape index: {}]
  %s5 = inlined_call_operand.vmem [shape: bf16[256,256], index: 5, kind: input, shape index: {}]
  %s6 = inlined_call_operand.vmem [shape: bf16[1,256], index: 6, kind: input, shape index: {}]
  %s7 = inlined_call_operand.vmem [shape: bf16[256,128], index: 7, kind: input, shape index: {}]
  %s8 = inlined_call_operand.vmem [shape: bf16[1,128], index: 8, kind: input, shape index: {}]
  %s9 = inlined_call_operand.vmem [shape: bf16[1,128], index: 9, kind: input, shape index: {}]
  %s10 = inlined_call_operand.<no memory space> [shape: f32[1,1], index: 10, kind: input, shape index: {}]
  %s11 = inlined_call_operand.hbm [shape: f32[1,512], index: 11, kind: output, shape index: {}]
  %s12 = sld [smem:[#allocation0]]
  $region77: #{_forward_impl.1} parent=0
    _
  %s14 = ssub.s32 1, %s12
  %s15 = scalar_select 0, %s14, %s12
  %v16 = vstv %s10
  %17 = vst [vmem:[#allocation2] sm:$0x1] %v16
  $region1: #{_forward_impl.1} parent=0
    #allocation3 [shape = 'u8[2048]{0}', space=vmem, size = 0x800, scoped, tag = 'output window, operand 0']
    #allocation4 [shape = 's32[2]{0}', space=sflag, size = 0x8, scoped, tag = 'scoped memory for _forward_impl.1']
    %18 = vsyncpa [#allocation4], 0
    %s19 = scalar_lea.sflag [#allocation4], 1
    %20 = vsyncpa %s19, 0
    loop: start=0, step=1, limit=4
    $region2: #{_forward_impl.1} parent=1 // loop_pre_header
      _
    $region3: #{_forward_impl.1} parent=1 // loop_header
      %s22 = sphi 0, %s26
      %p23 = scmp.ge.s32.totalorder %s22, 4
      %s32 = sphi 0, %s34
      %s35 = sphi 0, %s32
      %s36 = sphi 0, %s35
      %s52 = sphi 0, %s36
      %s56 = sphi 0, %s56
      %s58 = sphi 0, %s56
      %s59 = sphi 0, %s58
      %s73 = sphi 0, %s59
      %s77 = sphi 0, %s77
      %s79 = sphi 0, %s77
      %s80 = sphi 0, %s79
      %s94 = sphi 0, %s80
      %s98 = sphi 0, %s98
      %s100 = sphi 0, %s98
      %s101 = sphi 0, %s100
      %s115 = sphi 0, %s101
      %s119 = sphi 0, %s119
      %s121 = sphi 0, %s119
      %s122 = sphi 0, %s121
      %s136 = sphi 0, %s122
      %s140 = sphi 0, %s140
      %s142 = sphi 0, %s140
      %s143 = sphi 0, %s142
      %s157 = sphi 0, %s143
      %s161 = sphi 0, %s161
      %s163 = sphi 0, %s161
      %s164 = sphi 0, %s163
      %s178 = sphi 0, %s164
      %s182 = sphi 0, %s182
      %s184 = sphi 0, %s182
      %s185 = sphi 0, %s184
      %s199 = sphi 0, %s185
      %s203 = sphi 0, %s203
      %s205 = sphi 0, %s203
      %s206 = sphi 0, %s205
      %s220 = sphi 0, %s206
      %s224 = sphi 0, %s224
      %s226 = sphi 0, %s224
      %s227 = sphi 0, %s226
      %s241 = sphi 0, %s227
      %s245 = sphi 0, %s245
      %s247 = sphi 0, %s245
      %s248 = sphi 0, %s247
      %s262 = sphi 0, %s248
      %s268 = sphi 0, %s270
      %s271 = sphi 0, %s268
      %s272 = sphi 0, %s271
      %s288 = sphi 0, %s272
    $region4: #{_forward_impl.1} parent=1 // loop_header_branch
      %25 = sbr.rel (%p23) target = $region8
    $region5: #{_forward_impl.1} parent=1 // loop_body
      %s27 = ssub.s32 %s22, 1
      %s28 = ssub.s32 %s22, 2
      %s29 = sadd.s32 %s22, 1
      %s30 = ssub.s32 %s22, %s29
      %p31 = scmp.eq.s32.totalorder %s30, 0
      %s33 = sadd.s32 %s32, 1
      %s34 = scalar_select %p31, %s32, %s33
      %p37 = pneg %p31
      %p38 = scmp.eq.s32.totalorder %s22, 1
      %p39 = por %p37, %p38
      %p40 = scmp.ne.s32.totalorder %s32, %s35
      %p41 = scmp.eq.s32.totalorder %s22, 0
      %p42 = por %p40, %p41
      %p43 = scmp.ne.s32.totalorder %s32, %s35
      %p44 = scmp.eq.s32.totalorder %s27, 1
      %p45 = por %p43, %p44
      %p46 = scmp.ne.s32.totalorder %s35, %s36
      %p47 = scmp.eq.s32.totalorder %s27, 0
      %p48 = por %p46, %p47
      %p49 = scmp.ne.s32.totalorder %s35, %s36
      %p50 = scmp.eq.s32.totalorder %s28, 1
      %p51 = por %p49, %p50
      %p53 = scmp.ne.s32.totalorder %s36, %s52
      %p54 = scmp.eq.s32.totalorder %s28, 0
      %p55 = por %p53, %p54
      %s57 = sadd.s32 %s56, 1
      %p60 = scmp.eq.s32.totalorder %s22, 1
      %p61 = scmp.ne.s32.totalorder %s56, %s58
      %p62 = scmp.eq.s32.totalorder %s22, 0
      %p63 = por %p61, %p62
      %p64 = scmp.ne.s32.totalorder %s56, %s58
      %p65 = scmp.eq.s32.totalorder %s27, 1
      %p66 = por %p64, %p65
      %p67 = scmp.ne.s32.totalorder %s58, %s59
      %p68 = scmp.eq.s32.totalorder %s27, 0
      %p69 = por %p67, %p68
      %p70 = scmp.ne.s32.totalorder %s58, %s59
      %p71 = scmp.eq.s32.totalorder %s28, 1
      %p72 = por %p70, %p71
      %p74 = scmp.ne.s32.totalorder %s59, %s73
      %p75 = scmp.eq.s32.totalorder %s28, 0
      %p76 = por %p74, %p75
      %s78 = sadd.s32 %s77, 1
      %p81 = scmp.eq.s32.totalorder %s22, 1
      %p82 = scmp.ne.s32.totalorder %s77, %s79
      %p83 = scmp.eq.s32.totalorder %s22, 0
      %p84 = por %p82, %p83
      %p85 = scmp.ne.s32.totalorder %s77, %s79
      %p86 = scmp.eq.s32.totalorder %s27, 1
      %p87 = por %p85, %p86
      %p88 = scmp.ne.s32.totalorder %s79, %s80
      %p89 = scmp.eq.s32.totalorder %s27, 0
      %p90 = por %p88, %p89
      %p91 = scmp.ne.s32.totalorder %s79, %s80
      %p92 = scmp.eq.s32.totalorder %s28, 1
      %p93 = por %p91, %p92
      %p95 = scmp.ne.s32.totalorder %s80, %s94
      %p96 = scmp.eq.s32.totalorder %s28, 0
      %p97 = por %p95, %p96
      %s99 = sadd.s32 %s98, 1
      %p102 = scmp.eq.s32.totalorder %s22, 1
      %p103 = scmp.ne.s32.totalorder %s98, %s100
      %p104 = scmp.eq.s32.totalorder %s22, 0
      %p105 = por %p103, %p104
      %p106 = scmp.ne.s32.totalorder %s98, %s100
      %p107 = scmp.eq.s32.totalorder %s27, 1
      %p108 = por %p106, %p107
      %p109 = scmp.ne.s32.totalorder %s100, %s101
      %p110 = scmp.eq.s32.totalorder %s27, 0
      %p111 = por %p109, %p110
      %p112 = scmp.ne.s32.totalorder %s100, %s101
      %p113 = scmp.eq.s32.totalorder %s28, 1
      %p114 = por %p112, %p113
      %p116 = scmp.ne.s32.totalorder %s101, %s115
      %p117 = scmp.eq.s32.totalorder %s28, 0
      %p118 = por %p116, %p117
      %s120 = sadd.s32 %s119, 1
      %p123 = scmp.eq.s32.totalorder %s22, 1
      %p124 = scmp.ne.s32.totalorder %s119, %s121
      %p125 = scmp.eq.s32.totalorder %s22, 0
      %p126 = por %p124, %p125
      %p127 = scmp.ne.s32.totalorder %s119, %s121
      %p128 = scmp.eq.s32.totalorder %s27, 1
      %p129 = por %p127, %p128
      %p130 = scmp.ne.s32.totalorder %s121, %s122
      %p131 = scmp.eq.s32.totalorder %s27, 0
      %p132 = por %p130, %p131
      %p133 = scmp.ne.s32.totalorder %s121, %s122
      %p134 = scmp.eq.s32.totalorder %s28, 1
      %p135 = por %p133, %p134
      %p137 = scmp.ne.s32.totalorder %s122, %s136
      %p138 = scmp.eq.s32.totalorder %s28, 0
      %p139 = por %p137, %p138
      %s141 = sadd.s32 %s140, 1
      %p144 = scmp.eq.s32.totalorder %s22, 1
      %p145 = scmp.ne.s32.totalorder %s140, %s142
      %p146 = scmp.eq.s32.totalorder %s22, 0
      %p147 = por %p145, %p146
      %p148 = scmp.ne.s32.totalorder %s140, %s142
      %p149 = scmp.eq.s32.totalorder %s27, 1
      %p150 = por %p148, %p149
      %p151 = scmp.ne.s32.totalorder %s142, %s143
      %p152 = scmp.eq.s32.totalorder %s27, 0
      %p153 = por %p151, %p152
      %p154 = scmp.ne.s32.totalorder %s142, %s143
      %p155 = scmp.eq.s32.totalorder %s28, 1
      %p156 = por %p154, %p155
      %p158 = scmp.ne.s32.totalorder %s143, %s157
      %p159 = scmp.eq.s32.totalorder %s28, 0
      %p160 = por %p158, %p159
      %s162 = sadd.s32 %s161, 1
      %p165 = scmp.eq.s32.totalorder %s22, 1
      %p166 = scmp.ne.s32.totalorder %s161, %s163
      %p167 = scmp.eq.s32.totalorder %s22, 0
      %p168 = por %p166, %p167
      %p169 = scmp.ne.s32.totalorder %s161, %s163
      %p170 = scmp.eq.s32.totalorder %s27, 1
      %p171 = por %p169, %p170
      %p172 = scmp.ne.s32.totalorder %s163, %s164
      %p173 = scmp.eq.s32.totalorder %s27, 0
      %p174 = por %p172, %p173
      %p175 = scmp.ne.s32.totalorder %s163, %s164
      %p176 = scmp.eq.s32.totalorder %s28, 1
      %p177 = por %p175, %p176
      %p179 = scmp.ne.s32.totalorder %s164, %s178
      %p180 = scmp.eq.s32.totalorder %s28, 0
      %p181 = por %p179, %p180
      %s183 = sadd.s32 %s182, 1
      %p186 = scmp.eq.s32.totalorder %s22, 1
      %p187 = scmp.ne.s32.totalorder %s182, %s184
      %p188 = scmp.eq.s32.totalorder %s22, 0
      %p189 = por %p187, %p188
      %p190 = scmp.ne.s32.totalorder %s182, %s184
      %p191 = scmp.eq.s32.totalorder %s27, 1
      %p192 = por %p190, %p191
      %p193 = scmp.ne.s32.totalorder %s184, %s185
      %p194 = scmp.eq.s32.totalorder %s27, 0
      %p195 = por %p193, %p194
      %p196 = scmp.ne.s32.totalorder %s184, %s185
      %p197 = scmp.eq.s32.totalorder %s28, 1
      %p198 = por %p196, %p197
      %p200 = scmp.ne.s32.totalorder %s185, %s199
      %p201 = scmp.eq.s32.totalorder %s28, 0
      %p202 = por %p200, %p201
      %s204 = sadd.s32 %s203, 1
      %p207 = scmp.eq.s32.totalorder %s22, 1
      %p208 = scmp.ne.s32.totalorder %s203, %s205
      %p209 = scmp.eq.s32.totalorder %s22, 0
      %p210 = por %p208, %p209
      %p211 = scmp.ne.s32.totalorder %s203, %s205
      %p212 = scmp.eq.s32.totalorder %s27, 1
      %p213 = por %p211, %p212
      %p214 = scmp.ne.s32.totalorder %s205, %s206
      %p215 = scmp.eq.s32.totalorder %s27, 0
      %p216 = por %p214, %p215
      %p217 = scmp.ne.s32.totalorder %s205, %s206
      %p218 = scmp.eq.s32.totalorder %s28, 1
      %p219 = por %p217, %p218
      %p221 = scmp.ne.s32.totalorder %s206, %s220
      %p222 = scmp.eq.s32.totalorder %s28, 0
      %p223 = por %p221, %p222
      %s225 = sadd.s32 %s224, 1
      %p228 = scmp.eq.s32.totalorder %s22, 1
      %p229 = scmp.ne.s32.totalorder %s224, %s226
      %p230 = scmp.eq.s32.totalorder %s22, 0
      %p231 = por %p229, %p230
      %p232 = scmp.ne.s32.totalorder %s224, %s226
      %p233 = scmp.eq.s32.totalorder %s27, 1
      %p234 = por %p232, %p233
      %p235 = scmp.ne.s32.totalorder %s226, %s227
      %p236 = scmp.eq.s32.totalorder %s27, 0
      %p237 = por %p235, %p236
      %p238 = scmp.ne.s32.totalorder %s226, %s227
      %p239 = scmp.eq.s32.totalorder %s28, 1
      %p240 = por %p238, %p239
      %p242 = scmp.ne.s32.totalorder %s227, %s241
      %p243 = scmp.eq.s32.totalorder %s28, 0
      %p244 = por %p242, %p243
      %s246 = sadd.s32 %s245, 1
      %p249 = scmp.eq.s32.totalorder %s22, 1
      %p250 = scmp.ne.s32.totalorder %s245, %s247
      %p251 = scmp.eq.s32.totalorder %s22, 0
      %p252 = por %p250, %p251
      %p253 = scmp.ne.s32.totalorder %s245, %s247
      %p254 = scmp.eq.s32.totalorder %s27, 1
      %p255 = por %p253, %p254
      %p256 = scmp.ne.s32.totalorder %s247, %s248
      %p257 = scmp.eq.s32.totalorder %s27, 0
      %p258 = por %p256, %p257
      %p259 = scmp.ne.s32.totalorder %s247, %s248
      %p260 = scmp.eq.s32.totalorder %s28, 1
      %p261 = por %p259, %p260
      %p263 = scmp.ne.s32.totalorder %s248, %s262
      %p264 = scmp.eq.s32.totalorder %s28, 0
      %p265 = por %p263, %p264
      %s266 = ssub.s32 %s22, %s29
      %p267 = scmp.eq.s32.totalorder %s266, 0
      %s269 = sadd.s32 %s268, 1
      %s270 = scalar_select %p267, %s268, %s269
      %p273 = pneg %p267
      %p274 = scmp.eq.s32.totalorder %s22, 1
      %p275 = por %p273, %p274
      %p276 = scmp.ne.s32.totalorder %s268, %s271
      %p277 = scmp.eq.s32.totalorder %s22, 0
      %p278 = por %p276, %p277
      %p279 = scmp.ne.s32.totalorder %s268, %s271
      %p280 = scmp.eq.s32.totalorder %s27, 1
      %p281 = por %p279, %p280
      %p282 = scmp.ne.s32.totalorder %s271, %s272
      %p283 = scmp.eq.s32.totalorder %s27, 0
      %p284 = por %p282, %p283
      %p285 = scmp.ne.s32.totalorder %s271, %s272
      %p286 = scmp.eq.s32.totalorder %s28, 1
      %p287 = por %p285, %p286
      %p289 = scmp.ne.s32.totalorder %s272, %s288
      %p290 = scmp.eq.s32.totalorder %s28, 0
      %p291 = por %p289, %p290
      %p292 = scmp.le.s32.totalorder 1, %s22
      %p293 = scmp.lt.s32.totalorder %s22, 3
      %p294 = pnand %p292, %p293
      %p295 = pneg %p294
      // Predicated region
      $region9: #{_forward_impl.1} parent=5 // pred_check
        _
      $region10: #{_forward_impl.1} parent=5 // pred_check_branch
        %297 = sbr.rel (%p294) target = $region12
      $region11: #{_forward_impl.1} parent=5 // pred_region
        %s298 = ssub.s32 %s22, 1
        // Predicated region
        $region13: #{_forward_impl.1} parent=11 // pred_check
          %p299 = pneg %p69
        $region14: #{_forward_impl.1} parent=11 // pred_check_branch
          %301 = sbr.rel (%p299) target = $region16
        $region15: #{_forward_impl.1} parent=11 // pred_region
          _
        $region16: #{_forward_impl.1} parent=11 // pred_fallthru
          _
        // Predicated region
        $region17: #{_forward_impl.1} parent=11 // pred_check
          %p302 = pneg %p90
        $region18: #{_forward_impl.1} parent=11 // pred_check_branch
          %304 = sbr.rel (%p302) target = $region20
        $region19: #{_forward_impl.1} parent=11 // pred_region
          _
        $region20: #{_forward_impl.1} parent=11 // pred_fallthru
          _
        // Predicated region
        $region21: #{_forward_impl.1} parent=11 // pred_check
          %p305 = pneg %p111
        $region22: #{_forward_impl.1} parent=11 // pred_check_branch
          %307 = sbr.rel (%p305) target = $region24
        $region23: #{_forward_impl.1} parent=11 // pred_region
          _
        $region24: #{_forward_impl.1} parent=11 // pred_fallthru
          _
        // Predicated region
        $region25: #{_forward_impl.1} parent=11 // pred_check
          %p308 = pneg %p132
        $region26: #{_forward_impl.1} parent=11 // pred_check_branch
          %310 = sbr.rel (%p308) target = $region28
        $region27: #{_forward_impl.1} parent=11 // pred_region
          _
        $region28: #{_forward_impl.1} parent=11 // pred_fallthru
          _
        // Predicated region
        $region29: #{_forward_impl.1} parent=11 // pred_check
          %p311 = pneg %p153
        $region30: #{_forward_impl.1} parent=11 // pred_check_branch
          %313 = sbr.rel (%p311) target = $region32
        $region31: #{_forward_impl.1} parent=11 // pred_region
          _
        $region32: #{_forward_impl.1} parent=11 // pred_fallthru
          _
        // Predicated region
        $region33: #{_forward_impl.1} parent=11 // pred_check
          %p314 = pneg %p174
        $region34: #{_forward_impl.1} parent=11 // pred_check_branch
          %316 = sbr.rel (%p314) target = $region36
        $region35: #{_forward_impl.1} parent=11 // pred_region
          _
        $region36: #{_forward_impl.1} parent=11 // pred_fallthru
          _
        // Predicated region
        $region37: #{_forward_impl.1} parent=11 // pred_check
          %p317 = pneg %p195
        $region38: #{_forward_impl.1} parent=11 // pred_check_branch
          %319 = sbr.rel (%p317) target = $region40
        $region39: #{_forward_impl.1} parent=11 // pred_region
          _
        $region40: #{_forward_impl.1} parent=11 // pred_fallthru
          _
        // Predicated region
        $region41: #{_forward_impl.1} parent=11 // pred_check
          %p320 = pneg %p216
        $region42: #{_forward_impl.1} parent=11 // pred_check_branch
          %322 = sbr.rel (%p320) target = $region44
        $region43: #{_forward_impl.1} parent=11 // pred_region
          _
        $region44: #{_forward_impl.1} parent=11 // pred_fallthru
          _
        // Predicated region
        $region45: #{_forward_impl.1} parent=11 // pred_check
          %p323 = pneg %p237
        $region46: #{_forward_impl.1} parent=11 // pred_check_branch
          %325 = sbr.rel (%p323) target = $region48
        $region47: #{_forward_impl.1} parent=11 // pred_region
          _
        $region48: #{_forward_impl.1} parent=11 // pred_fallthru
          _
        // Predicated region
        $region49: #{_forward_impl.1} parent=11 // pred_check
          %p326 = pneg %p258
        $region50: #{_forward_impl.1} parent=11 // pred_check_branch
          %328 = sbr.rel (%p326) target = $region52
        $region51: #{_forward_impl.1} parent=11 // pred_region
          _
        $region52: #{_forward_impl.1} parent=11 // pred_fallthru
          _
      $region12: #{_forward_impl.1} parent=5 // pred_fallthru
        _
      %p329 = scmp.lt.s32.totalorder %s22, 2
      // Predicated region
      $region53: #{_forward_impl.1} parent=5 // pred_check
        %p330 = pneg %p329
      $region54: #{_forward_impl.1} parent=5 // pred_check_branch
        %332 = sbr.rel (%p330) target = $region56
      $region55: #{_forward_impl.1} parent=5 // pred_region
        // Predicated region
        $region57: #{_forward_impl.1} parent=55 // pred_check
          %p333 = pneg %p42
        $region58: #{_forward_impl.1} parent=55 // pred_check_branch
          %335 = sbr.rel (%p333) target = $region60
        $region59: #{_forward_impl.1} parent=55 // pred_region
          %s336 = smul.u32 32, %s22
          %p337 = scmp.lt.s32.totalorder %s336, 63
          %s338 = scalar_select %p337, %s336, 63
          %s339 = smul.addr %s338, 4
          %s340 = scalar_lea.vmem %s0, %s339
          %s341 = smul.u32 32, %s22
        $region60: #{_forward_impl.1} parent=55 // pred_fallthru
          _
      $region56: #{_forward_impl.1} parent=5 // pred_fallthru
        _
      %p342 = scmp.le.s32.totalorder 1, %s22
      %p343 = scmp.lt.s32.totalorder %s22, 3
      %p344 = pnand %p342, %p343
      %p345 = pneg %p344
      // Predicated region
      $region61: #{_forward_impl.1} parent=5 // pred_check
        _
      $region62: #{_forward_impl.1} parent=5 // pred_check_branch
        %347 = sbr.rel (%p344) target = $region64
      $region63: #{_forward_impl.1} parent=5 // pred_region
        %s348 = ssub.s32 %s22, 1
        %s349 = smul.u32 32, %s27
        %p350 = scmp.lt.s32.totalorder %s349, 63
        %s351 = scalar_select %p350, %s349, 63
        %s352 = smul.addr %s351, 4
        %s353 = scalar_lea.vmem %s0, %s352
        %p354 = pneg %p48
        %p355 = pneg %p45
        %p356 = pneg %p69
        %p357 = pneg %p66
        %p358 = pneg %p90
        %p359 = pneg %p87
        %p360 = pneg %p111
        %p361 = pneg %p108
        %p362 = pneg %p132
        %p363 = pneg %p129
        %p364 = pneg %p153
        %p365 = pneg %p150
        %p366 = pneg %p174
        %p367 = pneg %p171
        %p368 = pneg %p195
        %p369 = pneg %p192
        %p370 = pneg %p216
        %p371 = pneg %p213
        %p372 = pneg %p237
        %p373 = pneg %p234
        %p374 = pneg %p258
        %p375 = pneg %p255
        %p376 = pneg %p284
        %p377 = pneg %p281
        %s378 = sand.u32 %s271, 1
        %s379 = scalar_lea.sflag [#allocation4], %s378
        %s380 = sand.u32 %s271, 1
        %s381 = smul.addr %s380, 2
        %s382 = scalar_lea.vmem [#allocation3], %s381
        %s383 = smul.u32 32, %s27
        %p384 = scmp.lt.s32.totalorder %s383, 63
        %s385 = scalar_select %p384, %s383, 63
        %s386 = smul.addr %s385, 4
        %s387 = scalar_lea.vmem %s0, %s386
        %s388 = smul.u32 32, %s27
        %s389 = smul.u32 2, %s27
        %v391 = vld [vmem:[%s387] sm:$0xf]
        %v392 = vld [vmem:[%s387 + $0x4] sm:$0xf]
        %v393 = vld [vmem:[%s387 + $0x8] sm:$0xf]
        %v394 = vld [vmem:[%s387 + $0xc] sm:$0xf]
        %v395 = vld [vmem:[%s387 + $0x10] sm:$0xf]
        %v396 = vld [vmem:[%s387 + $0x14] sm:$0xf]
        %v397 = vld [vmem:[%s387 + $0x18] sm:$0xf]
        %v398 = vld [vmem:[%s387 + $0x1c] sm:$0xf]
        %v399 = vld [vmem:[%s387 + $0x20] sm:$0xf]
        %v400 = vld [vmem:[%s387 + $0x24] sm:$0xf]
        %v401 = vld [vmem:[%s387 + $0x28] sm:$0xf]
        %v402 = vld [vmem:[%s387 + $0x2c] sm:$0xf]
        %v403 = vld [vmem:[%s387 + $0x30] sm:$0xf]
        %v404 = vld [vmem:[%s387 + $0x34] sm:$0xf]
        %v405 = vld [vmem:[%s387 + $0x38] sm:$0xf]
        %v406 = vld [vmem:[%s387 + $0x3c] sm:$0xf]
        %v407 = vld [vmem:[%s387 + $0x40] sm:$0xf]
        %v408 = vld [vmem:[%s387 + $0x44] sm:$0xf]
        %v409 = vld [vmem:[%s387 + $0x48] sm:$0xf]
        %v410 = vld [vmem:[%s387 + $0x4c] sm:$0xf]
        %v411 = vld [vmem:[%s387 + $0x50] sm:$0xf]
        %v412 = vld [vmem:[%s387 + $0x54] sm:$0xf]
        %v413 = vld [vmem:[%s387 + $0x58] sm:$0xf]
        %v414 = vld [vmem:[%s387 + $0x5c] sm:$0xf]
        %v415 = vld [vmem:[%s387 + $0x60] sm:$0xf]
        %v416 = vld [vmem:[%s387 + $0x64] sm:$0xf]
        %v417 = vld [vmem:[%s387 + $0x68] sm:$0xf]
        %v418 = vld [vmem:[%s387 + $0x6c] sm:$0xf]
        %v419 = vld [vmem:[%s387 + $0x70] sm:$0xf]
        %v420 = vld [vmem:[%s387 + $0x74] sm:$0xf]
        %v421 = vld [vmem:[%s387 + $0x78] sm:$0xf]
        %v422 = vld [vmem:[%s387 + $0x7c] sm:$0xf]
        %v423 = vld [vmem:[%s1] sm:$0xff]
        %v424 = vld [vmem:[%s1 + $0x8] sm:$0xff]
        %v425 = vld [vmem:[%s1 + $0x10] sm:$0xff]
        %v426 = vld [vmem:[%s1 + $0x18] sm:$0xff]
        %v427 = vld [vmem:[%s1 + $0x20] sm:$0xff]
        %v428 = vld [vmem:[%s1 + $0x28] sm:$0xff]
        %v429 = vld [vmem:[%s1 + $0x30] sm:$0xff]
        %v430 = vld [vmem:[%s1 + $0x38] sm:$0xff]
        %v463 = vunpack.c.l.b16 %v391
        %v464 = vunpack.c.l.b16 %v392
        %v465 = vunpack.c.l.b16 %v393
        %v466 = vunpack.c.l.b16 %v394
        %v467 = vunpack.c.l.b16 %v395
        %v468 = vunpack.c.l.b16 %v396
        %v469 = vunpack.c.l.b16 %v397
        %v470 = vunpack.c.l.b16 %v398
        %v471 = vunpack.c.l.b16 %v399
        %v472 = vunpack.c.l.b16 %v400
        %v473 = vunpack.c.l.b16 %v401
        %v474 = vunpack.c.l.b16 %v402
        %v475 = vunpack.c.l.b16 %v403
        %v476 = vunpack.c.l.b16 %v404
        %v477 = vunpack.c.l.b16 %v405
        %v478 = vunpack.c.l.b16 %v406
        %v479 = vunpack.c.l.b16 %v407
        %v480 = vunpack.c.l.b16 %v408
        %v481 = vunpack.c.l.b16 %v409
        %v482 = vunpack.c.l.b16 %v410
        %v483 = vunpack.c.l.b16 %v411
        %v484 = vunpack.c.l.b16 %v412
        %v485 = vunpack.c.l.b16 %v413
        %v486 = vunpack.c.l.b16 %v414
        %v487 = vunpack.c.l.b16 %v415
        %v488 = vunpack.c.l.b16 %v416
        %v489 = vunpack.c.l.b16 %v417
        %v490 = vunpack.c.l.b16 %v418
        %v491 = vunpack.c.l.b16 %v419
        %v492 = vunpack.c.l.b16 %v420
        %v493 = vunpack.c.l.b16 %v421
        %v494 = vunpack.c.l.b16 %v422
        %v495 = vpack.c.b16 %v464, %v463
        %v496 = vpack.c.b16 %v466, %v465
        %v497 = vpack.c.b16 %v468, %v467
        %v498 = vpack.c.b16 %v470, %v469
        %v499 = vpack.c.b16 %v472, %v471
        %v500 = vpack.c.b16 %v474, %v473
        %v501 = vpack.c.b16 %v476, %v475
        %v502 = vpack.c.b16 %v478, %v477
        %v503 = vpack.c.b16 %v480, %v479
        %v504 = vpack.c.b16 %v482, %v481
        %v505 = vpack.c.b16 %v484, %v483
        %v506 = vpack.c.b16 %v486, %v485
        %v507 = vpack.c.b16 %v488, %v487
        %v508 = vpack.c.b16 %v490, %v489
        %v509 = vpack.c.b16 %v492, %v491
        %v510 = vpack.c.b16 %v494, %v493
        %v519 = vunpack.c.l.b16 %v423
        %v520 = vunpack.c.h.b16 %v423
        %v521 = vunpack.c.l.b16 %v424
        %v522 = vunpack.c.h.b16 %v424
        %v523 = vunpack.c.l.b16 %v425
        %v524 = vunpack.c.h.b16 %v425
        %v525 = vunpack.c.l.b16 %v426
        %v526 = vunpack.c.h.b16 %v426
        %v527 = vunpack.c.l.b16 %v427
        %v528 = vunpack.c.h.b16 %v427
        %v529 = vunpack.c.l.b16 %v428
        %v530 = vunpack.c.h.b16 %v428
        %v531 = vunpack.c.l.b16 %v429
        %v532 = vunpack.c.h.b16 %v429
        %v533 = vunpack.c.l.b16 %v430
        %v534 = vunpack.c.h.b16 %v430
        %v535 = vpack.c.b16 %v523, %v519
        %v536 = vpack.c.b16 %v524, %v520
        %v537 = vpack.c.b16 %v525, %v521
        %v538 = vpack.c.b16 %v526, %v522
        %v539 = vpack.c.b16 %v531, %v527
        %v540 = vpack.c.b16 %v532, %v528
        %v541 = vpack.c.b16 %v533, %v529
        %v542 = vpack.c.b16 %v534, %v530
        %vm551 = vcmask 261120
        %v553 = vsel %vm551, %v495, 0
        %v556 = vsel %vm551, %v496, 0
        %v559 = vsel %vm551, %v497, 0
        %v562 = vsel %vm551, %v498, 0
        %v565 = vsel %vm551, %v499, 0
        %v568 = vsel %vm551, %v500, 0
        %v571 = vsel %vm551, %v501, 0
        %v574 = vsel %vm551, %v502, 0
        %v577 = vsel %vm551, %v503, 0
        %v580 = vsel %vm551, %v504, 0
        %v583 = vsel %vm551, %v505, 0
        %v586 = vsel %vm551, %v506, 0
        %v589 = vsel %vm551, %v507, 0
        %v592 = vsel %vm551, %v508, 0
        %v595 = vsel %vm551, %v509, 0
        %v598 = vsel %vm551, %v510, 0
        %600 = vmatprep.subr.bf16.mxu0 %v536
        %601 = vmatpush1.bf16.msra.mxu0 %v535
        %602 = vmatprep.subr.bf16.mxu0 %v540
        %603 = vmatpush1.bf16.msra.mxu0 %v539
        %604 = vmatprep.subr.bf16.mxu0 0
        %605 = vmatpush1.bf16.msra.mxu0 0
        %606 = vmatprep.subr.bf16.mxu0 0
        %607 = vmatpush1.bf16.msra.mxu0 0
        %608 = vmatprep.subr.bf16.mxu0 0
        %609 = vmatpush1.bf16.msra.mxu0 0
        %610 = vmatprep.subr.bf16.mxu0 0
        %611 = vmatpush1.bf16.msra.mxu0 0
        %612 = vmatprep.subr.bf16.mxu0 0
        %613 = vmatpush1.bf16.msra.mxu0 0
        %614 = vmatprep.subr.bf16.mxu0 0
        %615 = vmatpush1.bf16.msra.mxu0 0
        %616 = vmatprep.subr.bf16.mxu0 0
        %617 = vmatpush1.bf16.msra.mxu0 0
        %618 = vmatprep.subr.bf16.mxu0 0
        %619 = vmatpush1.bf16.msra.mxu0 0
        %620 = vmatprep.subr.bf16.mxu0 0
        %621 = vmatpush1.bf16.msra.mxu0 0
        %622 = vmatprep.subr.bf16.mxu0 0
        %623 = vmatpush1.bf16.msra.mxu0 0
        %624 = vmatprep.subr.bf16.mxu0 0
        %625 = vmatpush1.bf16.msra.mxu0 0
        %626 = vmatprep.subr.bf16.mxu0 0
        %627 = vmatpush1.bf16.msra.mxu0 0
        %628 = vmatprep.subr.bf16.mxu0 0
        %629 = vmatpush1.bf16.msra.mxu0 0
        %630 = vmatprep.subr.bf16.mxu0 0
        %631 = vmatpush1.bf16.msra.mxu0 0
        %632 = vmatprep.mubr.bf16.mxu0 0
        %633 = vmatmul.mubr.bf16.gmra.mrb[0].mxu0 %v553
        %v634 = vpop.f32.mrb[0].mxu0
        %v635 = vadd.f32 0.0, %v634
        %v636 = vpop.f32.mrb[0].mxu0
        %v637 = vadd.f32 0.0, %v636
        %v638 = vpop.f32.mrb[0].mxu0
        %v639 = vadd.f32 0.0, %v638
        %v640 = vpop.f32.mrb[0].mxu0
        %v641 = vadd.f32 0.0, %v640
        %642 = vmatprep.mubr.bf16.mxu0 0
        %643 = vmatmul.mubr.bf16.gmra.mrb[0].mxu0 %v556
        %v644 = vpop.f32.mrb[0].mxu0
        %v645 = vadd.f32 0.0, %v644
        %v646 = vpop.f32.mrb[0].mxu0
        %v647 = vadd.f32 0.0, %v646
        %v648 = vpop.f32.mrb[0].mxu0
        %v649 = vadd.f32 0.0, %v648
        %v650 = vpop.f32.mrb[0].mxu0
        %v651 = vadd.f32 0.0, %v650
        %652 = vmatprep.mubr.bf16.mxu0 0
        %653 = vmatmul.mubr.bf16.gmra.mrb[0].mxu0 %v559
        %v654 = vpop.f32.mrb[0].mxu0
        %v655 = vadd.f32 0.0, %v654
        %v656 = vpop.f32.mrb[0].mxu0
        %v657 = vadd.f32 0.0, %v656
        %v658 = vpop.f32.mrb[0].mxu0
        %v659 = vadd.f32 0.0, %v658
        %v660 = vpop.f32.mrb[0].mxu0
        %v661 = vadd.f32 0.0, %v660
        %662 = vmatprep.mubr.bf16.mxu0 0
        %663 = vmatmul.mubr.bf16.gmra.mrb[0].mxu0 %v562
        %v664 = vpop.f32.mrb[0].mxu0
        %v665 = vadd.f32 0.0, %v664
        %v666 = vpop.f32.mrb[0].mxu0
        %v667 = vadd.f32 0.0, %v666
        %v668 = vpop.f32.mrb[0].mxu0
        %v669 = vadd.f32 0.0, %v668
        %v670 = vpop.f32.mrb[0].mxu0
        %v671 = vadd.f32 0.0, %v670
        %672 = vmatprep.mubr.bf16.mxu0 0
        %673 = vmatmul.mubr.bf16.gmra.mrb[0].mxu0 %v565
        %v674 = vpop.f32.mrb[0].mxu0
        %v675 = vadd.f32 0.0, %v674
        %v676 = vpop.f32.mrb[0].mxu0
        %v677 = vadd.f32 0.0, %v676
        %v678 = vpop.f32.mrb[0].mxu0
        %v679 = vadd.f32 0.0, %v678
        %v680 = vpop.f32.mrb[0].mxu0
        %v681 = vadd.f32 0.0, %v680
        %682 = vmatprep.mubr.bf16.mxu0 0
        %683 = vmatmul.mubr.bf16.gmra.mrb[0].mxu0 %v568
        %v684 = vpop.f32.mrb[0].mxu0
        %v685 = vadd.f32 0.0, %v684
        %v686 = vpop.f32.mrb[0].mxu0
        %v687 = vadd.f32 0.0, %v686
        %v688 = vpop.f32.mrb[0].mxu0
        %v689 = vadd.f32 0.0, %v688
        %v690 = vpop.f32.mrb[0].mxu0
        %v691 = vadd.f32 0.0, %v690
        %692 = vmatprep.mubr.bf16.mxu0 0
        %693 = vmatmul.mubr.bf16.gmra.mrb[0].mxu0 %v571
        %v694 = vpop.f32.mrb[0].mxu0
        %v695 = vadd.f32 0.0, %v694
        %v696 = vpop.f32.mrb[0].mxu0
        %v697 = vadd.f32 0.0, %v696
        %v698 = vpop.f32.mrb[0].mxu0
        %v699 = vadd.f32 0.0, %v698
        %v700 = vpop.f32.mrb[0].mxu0
        %v701 = vadd.f32 0.0, %v700
        %702 = vmatprep.mubr.bf16.mxu0 0
        %703 = vmatmul.mubr.bf16.gmra.mrb[0].mxu0 %v574
        %v704 = vpop.f32.mrb[0].mxu0
        %v705 = vadd.f32 0.0, %v704
        %v706 = vpop.f32.mrb[0].mxu0
        %v707 = vadd.f32 0.0, %v706
        %v708 = vpop.f32.mrb[0].mxu0
        %v709 = vadd.f32 0.0, %v708
        %v710 = vpop.f32.mrb[0].mxu0
        %v711 = vadd.f32 0.0, %v710
        %712 = vmatprep.mubr.bf16.mxu0 0
        %713 = vmatmul.mubr.bf16.gmra.mrb[0].mxu0 %v577
        %v714 = vpop.f32.mrb[0].mxu0
        %v715 = vadd.f32 0.0, %v714
        %v716 = vpop.f32.mrb[0].mxu0
        %v717 = vadd.f32 0.0, %v716
        %v718 = vpop.f32.mrb[0].mxu0
        %v719 = vadd.f32 0.0, %v718
        %v720 = vpop.f32.mrb[0].mxu0
        %v721 = vadd.f32 0.0, %v720
        %722 = vmatprep.mubr.bf16.mxu0 0
        %723 = vmatmul.mubr.bf16.gmra.mrb[0].mxu0 %v580
        %v724 = vpop.f32.mrb[0].mxu0
        %v725 = vadd.f32 0.0, %v724
        %v726 = vpop.f32.mrb[0].mxu0
        %v727 = vadd.f32 0.0, %v726
        %v728 = vpop.f32.mrb[0].mxu0
        %v729 = vadd.f32 0.0, %v728
        %v730 = vpop.f32.mrb[0].mxu0
        %v731 = vadd.f32 0.0, %v730
        %732 = vmatprep.mubr.bf16.mxu0 0
        %733 = vmatmul.mubr.bf16.gmra.mrb[0].mxu0 %v583
        %v734 = vpop.f32.mrb[0].mxu0
        %v735 = vadd.f32 0.0, %v734
        %v736 = vpop.f32.mrb[0].mxu0
        %v737 = vadd.f32 0.0, %v736
        %v738 = vpop.f32.mrb[0].mxu0
        %v739 = vadd.f32 0.0, %v738
        %v740 = vpop.f32.mrb[0].mxu0
        %v741 = vadd.f32 0.0, %v740
        %742 = vmatprep.mubr.bf16.mxu0 0
        %743 = vmatmul.mubr.bf16.gmra.mrb[0].mxu0 %v586
        %v744 = vpop.f32.mrb[0].mxu0
        %v745 = vadd.f32 0.0, %v744
        %v746 = vpop.f32.mrb[0].mxu0
        %v747 = vadd.f32 0.0, %v746
        %v748 = vpop.f32.mrb[0].mxu0
        %v749 = vadd.f32 0.0, %v748
        %v750 = vpop.f32.mrb[0].mxu0
        %v751 = vadd.f32 0.0, %v750
        %752 = vmatprep.mubr.bf16.mxu0 0
        %753 = vmatmul.mubr.bf16.gmra.mrb[0].mxu0 %v589
        %v754 = vpop.f32.mrb[0].mxu0
        %v755 = vadd.f32 0.0, %v754
        %v756 = vpop.f32.mrb[0].mxu0
        %v757 = vadd.f32 0.0, %v756
        %v758 = vpop.f32.mrb[0].mxu0
        %v759 = vadd.f32 0.0, %v758
        %v760 = vpop.f32.mrb[0].mxu0
        %v761 = vadd.f32 0.0, %v760
        %762 = vmatprep.mubr.bf16.mxu0 0
        %763 = vmatmul.mubr.bf16.gmra.mrb[0].mxu0 %v592
        %v764 = vpop.f32.mrb[0].mxu0
        %v765 = vadd.f32 0.0, %v764
        %v766 = vpop.f32.mrb[0].mxu0
        %v767 = vadd.f32 0.0, %v766
        %v768 = vpop.f32.mrb[0].mxu0
        %v769 = vadd.f32 0.0, %v768
        %v770 = vpop.f32.mrb[0].mxu0
        %v771 = vadd.f32 0.0, %v770
        %772 = vmatprep.mubr.bf16.mxu0 0
        %773 = vmatmul.mubr.bf16.gmra.mrb[0].mxu0 %v595
        %v774 = vpop.f32.mrb[0].mxu0
        %v775 = vadd.f32 0.0, %v774
        %v776 = vpop.f32.mrb[0].mxu0
        %v777 = vadd.f32 0.0, %v776
        %v778 = vpop.f32.mrb[0].mxu0
        %v779 = vadd.f32 0.0, %v778
        %v780 = vpop.f32.mrb[0].mxu0
        %v781 = vadd.f32 0.0, %v780
        %782 = vmatprep.mubr.bf16.mxu0 0
        %783 = vmatmul.mubr.bf16.gmra.mrb[0].mxu0 %v598
        %v784 = vpop.f32.mrb[0].mxu0
        %v785 = vadd.f32 0.0, %v784
        %v786 = vpop.f32.mrb[0].mxu0
        %v787 = vadd.f32 0.0, %v786
        %v788 = vpop.f32.mrb[0].mxu0
        %v789 = vadd.f32 0.0, %v788
        %v790 = vpop.f32.mrb[0].mxu0
        %v791 = vadd.f32 0.0, %v790
        %792 = vdwg.mxu0
        %793 = vmatprep.subr.bf16.mxu0 %v538
        %794 = vmatpush1.bf16.msra.mxu0 %v537
        %795 = vmatprep.subr.bf16.mxu0 %v542
        %796 = vmatpush1.bf16.msra.mxu0 %v541
        %797 = vmatprep.subr.bf16.mxu0 0
        %798 = vmatpush1.bf16.msra.mxu0 0
        %799 = vmatprep.subr.bf16.mxu0 0
        %800 = vmatpush1.bf16.msra.mxu0 0
        %801 = vmatprep.subr.bf16.mxu0 0
        %802 = vmatpush1.bf16.msra.mxu0 0
        %803 = vmatprep.subr.bf16.mxu0 0
        %804 = vmatpush1.bf16.msra.mxu0 0
        %805 = vmatprep.subr.bf16.mxu0 0
        %806 = vmatpush1.bf16.msra.mxu0 0
        %807 = vmatprep.subr.bf16.mxu0 0
        %808 = vmatpush1.bf16.msra.mxu0 0
        %809 = vmatprep.subr.bf16.mxu0 0
        %810 = vmatpush1.bf16.msra.mxu0 0
        %811 = vmatprep.subr.bf16.mxu0 0
        %812 = vmatpush1.bf16.msra.mxu0 0
        %813 = vmatprep.subr.bf16.mxu0 0
        %814 = vmatpush1.bf16.msra.mxu0 0
        %815 = vmatprep.subr.bf16.mxu0 0
        %816 = vmatpush1.bf16.msra.mxu0 0
        %817 = vmatprep.subr.bf16.mxu0 0
        %818 = vmatpush1.bf16.msra.mxu0 0
        %819 = vmatprep.subr.bf16.mxu0 0
        %820 = vmatpush1.bf16.msra.mxu0 0
        %821 = vmatprep.subr.bf16.mxu0 0
        %822 = vmatpush1.bf16.msra.mxu0 0
        %823 = vmatprep.subr.bf16.mxu0 0
        %824 = vmatpush1.bf16.msra.mxu0 0
        %825 = vmatprep.mubr.bf16.mxu0 0
        %826 = vmatmul.mubr.bf16.gmra.mrb[0].mxu0 %v553
        %v827 = vpop.f32.mrb[0].mxu0
        %v828 = vadd.f32 0.0, %v827
        %v829 = vpop.f32.mrb[0].mxu0
        %v830 = vadd.f32 0.0, %v829
        %v831 = vpop.f32.mrb[0].mxu0
        %v832 = vadd.f32 0.0, %v831
        %v833 = vpop.f32.mrb[0].mxu0
        %v834 = vadd.f32 0.0, %v833
        %835 = vmatprep.mubr.bf16.mxu0 0
        %836 = vmatmul.mubr.bf16.gmra.mrb[0].mxu0 %v556
        %v837 = vpop.f32.mrb[0].mxu0
        %v838 = vadd.f32 0.0, %v837
        %v839 = vpop.f32.mrb[0].mxu0
        %v840 = vadd.f32 0.0, %v839
        %v841 = vpop.f32.mrb[0].mxu0
        %v842 = vadd.f32 0.0, %v841
        %v843 = vpop.f32.mrb[0].mxu0
        %v844 = vadd.f32 0.0, %v843
        %845 = vmatprep.mubr.bf16.mxu0 0
        %846 = vmatmul.mubr.bf16.gmra.mrb[0].mxu0 %v559
        %v847 = vpop.f32.mrb[0].mxu0
        %v848 = vadd.f32 0.0, %v847
        %v849 = vpop.f32.mrb[0].mxu0
        %v850 = vadd.f32 0.0, %v849
        %v851 = vpop.f32.mrb[0].mxu0
        %v852 = vadd.f32 0.0, %v851
        %v853 = vpop.f32.mrb[0].mxu0
        %v854 = vadd.f32 0.0, %v853
        %855 = vmatprep.mubr.bf16.mxu0 0
        %856 = vmatmul.mubr.bf16.gmra.mrb[0].mxu0 %v562
        %v857 = vpop.f32.mrb[0].mxu0
        %v858 = vadd.f32 0.0, %v857
        %v859 = vpop.f32.mrb[0].mxu0
        %v860 = vadd.f32 0.0, %v859
        %v861 = vpop.f32.mrb[0].mxu0
        %v862 = vadd.f32 0.0, %v861
        %v863 = vpop.f32.mrb[0].mxu0
        %v864 = vadd.f32 0.0, %v863
        %865 = vmatprep.mubr.bf16.mxu0 0
        %866 = vmatmul.mubr.bf16.gmra.mrb[0].mxu0 %v565
        %v867 = vpop.f32.mrb[0].mxu0
        %v868 = vadd.f32 0.0, %v867
        %v869 = vpop.f32.mrb[0].mxu0
        %v870 = vadd.f32 0.0, %v869
        %v871 = vpop.f32.mrb[0].mxu0
        %v872 = vadd.f32 0.0, %v871
        %v873 = vpop.f32.mrb[0].mxu0
        %v874 = vadd.f32 0.0, %v873
        %875 = vmatprep.mubr.bf16.mxu0 0
        %876 = vmatmul.mubr.bf16.gmra.mrb[0].mxu0 %v568
        %v877 = vpop.f32.mrb[0].mxu0
        %v878 = vadd.f32 0.0, %v877
        %v879 = vpop.f32.mrb[0].mxu0
        %v880 = vadd.f32 0.0, %v879
        %v881 = vpop.f32.mrb[0].mxu0
        %v882 = vadd.f32 0.0, %v881
        %v883 = vpop.f32.mrb[0].mxu0
        %v884 = vadd.f32 0.0, %v883
        %885 = vmatprep.mubr.bf16.mxu0 0
        %886 = vmatmul.mubr.bf16.gmra.mrb[0].mxu0 %v571
        %v887 = vpop.f32.mrb[0].mxu0
        %v888 = vadd.f32 0.0, %v887
        %v889 = vpop.f32.mrb[0].mxu0
        %v890 = vadd.f32 0.0, %v889
        %v891 = vpop.f32.mrb[0].mxu0
        %v892 = vadd.f32 0.0, %v891
        %v893 = vpop.f32.mrb[0].mxu0
        %v894 = vadd.f32 0.0, %v893
        %895 = vmatprep.mubr.bf16.mxu0 0
        %896 = vmatmul.mubr.bf16.gmra.mrb[0].mxu0 %v574
        %v897 = vpop.f32.mrb[0].mxu0
        %v898 = vadd.f32 0.0, %v897
        %v899 = vpop.f32.mrb[0].mxu0
        %v900 = vadd.f32 0.0, %v899
        %v901 = vpop.f32.mrb[0].mxu0
        %v902 = vadd.f32 0.0, %v901
        %v903 = vpop.f32.mrb[0].mxu0
        %v904 = vadd.f32 0.0, %v903
        %905 = vmatprep.mubr.bf16.mxu0 0
        %906 = vmatmul.mubr.bf16.gmra.mrb[0].mxu0 %v577
        %v907 = vpop.f32.mrb[0].mxu0
        %v908 = vadd.f32 0.0, %v907
        %v909 = vpop.f32.mrb[0].mxu0
        %v910 = vadd.f32 0.0, %v909
        %v911 = vpop.f32.mrb[0].mxu0
        %v912 = vadd.f32 0.0, %v911
        %v913 = vpop.f32.mrb[0].mxu0
        %v914 = vadd.f32 0.0, %v913
        %915 = vmatprep.mubr.bf16.mxu0 0
        %916 = vmatmul.mubr.bf16.gmra.mrb[0].mxu0 %v580
        %v917 = vpop.f32.mrb[0].mxu0
        %v918 = vadd.f32 0.0, %v917
        %v919 = vpop.f32.mrb[0].mxu0
        %v920 = vadd.f32 0.0, %v919
        %v921 = vpop.f32.mrb[0].mxu0
        %v922 = vadd.f32 0.0, %v921
        %v923 = vpop.f32.mrb[0].mxu0
        %v924 = vadd.f32 0.0, %v923
        %925 = vmatprep.mubr.bf16.mxu0 0
        %926 = vmatmul.mubr.bf16.gmra.mrb[0].mxu0 %v583
        %v927 = vpop.f32.mrb[0].mxu0
        %v928 = vadd.f32 0.0, %v927
        %v929 = vpop.f32.mrb[0].mxu0
        %v930 = vadd.f32 0.0, %v929
        %v931 = vpop.f32.mrb[0].mxu0
        %v932 = vadd.f32 0.0, %v931
        %v933 = vpop.f32.mrb[0].mxu0
        %v934 = vadd.f32 0.0, %v933
        %935 = vmatprep.mubr.bf16.mxu0 0
        %936 = vmatmul.mubr.bf16.gmra.mrb[0].mxu0 %v586
        %v937 = vpop.f32.mrb[0].mxu0
        %v938 = vadd.f32 0.0, %v937
        %v939 = vpop.f32.mrb[0].mxu0
        %v940 = vadd.f32 0.0, %v939
        %v941 = vpop.f32.mrb[0].mxu0
        %v942 = vadd.f32 0.0, %v941
        %v943 = vpop.f32.mrb[0].mxu0
        %v944 = vadd.f32 0.0, %v943
        %945 = vmatprep.mubr.bf16.mxu0 0
        %946 = vmatmul.mubr.bf16.gmra.mrb[0].mxu0 %v589
        %v947 = vpop.f32.mrb[0].mxu0
        %v948 = vadd.f32 0.0, %v947
        %v949 = vpop.f32.mrb[0].mxu0
        %v950 = vadd.f32 0.0, %v949
        %v951 = vpop.f32.mrb[0].mxu0
        %v952 = vadd.f32 0.0, %v951
        %v953 = vpop.f32.mrb[0].mxu0
        %v954 = vadd.f32 0.0, %v953
        %955 = vmatprep.mubr.bf16.mxu0 0
        %956 = vmatmul.mubr.bf16.gmra.mrb[0].mxu0 %v592
        %v957 = vpop.f32.mrb[0].mxu0
        %v958 = vadd.f32 0.0, %v957
        %v959 = vpop.f32.mrb[0].mxu0
        %v960 = vadd.f32 0.0, %v959
        %v961 = vpop.f32.mrb[0].mxu0
        %v962 = vadd.f32 0.0, %v961
        %v963 = vpop.f32.mrb[0].mxu0
        %v964 = vadd.f32 0.0, %v963
        %965 = vmatprep.mubr.bf16.mxu0 0
        %966 = vmatmul.mubr.bf16.gmra.mrb[0].mxu0 %v595
        %v967 = vpop.f32.mrb[0].mxu0
        %v968 = vadd.f32 0.0, %v967
        %v969 = vpop.f32.mrb[0].mxu0
        %v970 = vadd.f32 0.0, %v969
        %v971 = vpop.f32.mrb[0].mxu0
        %v972 = vadd.f32 0.0, %v971
        %v973 = vpop.f32.mrb[0].mxu0
        %v974 = vadd.f32 0.0, %v973
        %975 = vmatprep.mubr.bf16.mxu0 0
        %976 = vmatmul.mubr.bf16.gmra.mrb[0].mxu0 %v598
        %v977 = vpop.f32.mrb[0].mxu0
        %v978 = vadd.f32 0.0, %v977
        %v979 = vpop.f32.mrb[0].mxu0
        %v980 = vadd.f32 0.0, %v979
        %v981 = vpop.f32.mrb[0].mxu0
        %v982 = vadd.f32 0.0, %v981
        %v983 = vpop.f32.mrb[0].mxu0
        %v984 = vadd.f32 0.0, %v983
        %985 = vdwg.mxu0
        %v986 = vpack.c.bf16 %v639, %v635
        %v987 = vpack.c.bf16 %v641, %v637
        %v988 = vpack.c.bf16 %v832, %v828
        %v989 = vpack.c.bf16 %v834, %v830
        %v990 = vpack.c.bf16 %v649, %v645
        %v991 = vpack.c.bf16 %v651, %v647
        %v992 = vpack.c.bf16 %v842, %v838
        %v993 = vpack.c.bf16 %v844, %v840
        %v994 = vpack.c.bf16 %v659, %v655
        %v995 = vpack.c.bf16 %v661, %v657
        %v996 = vpack.c.bf16 %v852, %v848
        %v997 = vpack.c.bf16 %v854, %v850
        %v998 = vpack.c.bf16 %v669, %v665
        %v999 = vpack.c.bf16 %v671, %v667
        %v1000 = vpack.c.bf16 %v862, %v858
        %v1001 = vpack.c.bf16 %v864, %v860
        %v1002 = vpack.c.bf16 %v679, %v675
        %v1003 = vpack.c.bf16 %v681, %v677
        %v1004 = vpack.c.bf16 %v872, %v868
        %v1005 = vpack.c.bf16 %v874, %v870
        %v1006 = vpack.c.bf16 %v689, %v685
        %v1007 = vpack.c.bf16 %v691, %v687
        %v1008 = vpack.c.bf16 %v882, %v878
        %v1009 = vpack.c.bf16 %v884, %v880
        %v1010 = vpack.c.bf16 %v699, %v695
        %v1011 = vpack.c.bf16 %v701, %v697
        %v1012 = vpack.c.bf16 %v892, %v888
        %v1013 = vpack.c.bf16 %v894, %v890
        %v1014 = vpack.c.bf16 %v709, %v705
        %v1015 = vpack.c.bf16 %v711, %v707
        %v1016 = vpack.c.bf16 %v902, %v898
        %v1017 = vpack.c.bf16 %v904, %v900
        %v1018 = vpack.c.bf16 %v719, %v715
        %v1019 = vpack.c.bf16 %v721, %v717
        %v1020 = vpack.c.bf16 %v912, %v908
        %v1021 = vpack.c.bf16 %v914, %v910
        %v1022 = vpack.c.bf16 %v729, %v725
        %v1023 = vpack.c.bf16 %v731, %v727
        %v1024 = vpack.c.bf16 %v922, %v918
        %v1025 = vpack.c.bf16 %v924, %v920
        %v1026 = vpack.c.bf16 %v739, %v735
        %v1027 = vpack.c.bf16 %v741, %v737
        %v1028 = vpack.c.bf16 %v932, %v928
        %v1029 = vpack.c.bf16 %v934, %v930
        %v1030 = vpack.c.bf16 %v749, %v745
        %v1031 = vpack.c.bf16 %v751, %v747
        %v1032 = vpack.c.bf16 %v942, %v938
        %v1033 = vpack.c.bf16 %v944, %v940
        %v1034 = vpack.c.bf16 %v759, %v755
        %v1035 = vpack.c.bf16 %v761, %v757
        %v1036 = vpack.c.bf16 %v952, %v948
        %v1037 = vpack.c.bf16 %v954, %v950
        %v1038 = vpack.c.bf16 %v769, %v765
        %v1039 = vpack.c.bf16 %v771, %v767
        %v1040 = vpack.c.bf16 %v962, %v958
        %v1041 = vpack.c.bf16 %v964, %v960
        %v1042 = vpack.c.bf16 %v779, %v775
        %v1043 = vpack.c.bf16 %v781, %v777
        %v1044 = vpack.c.bf16 %v972, %v968
        %v1045 = vpack.c.bf16 %v974, %v970
        %v1046 = vpack.c.bf16 %v789, %v785
        %v1047 = vpack.c.bf16 %v791, %v787
        %v1048 = vpack.c.bf16 %v982, %v978
        %v1049 = vpack.c.bf16 %v984, %v980
        %v1050 = vld [vmem:[%s2] sm:$0xf]
        %v1053 = vunpack.c.l.s4 1966171168
        %v1054 = vunpack.c.0.s8 %v1053
        %v1055 = vlaneseq
        %v1056 = vshrl.u32 %v1055, 7
        %v1057 = vsub.s32 %v1054, %v1056
        %v1058 = vrot.slane %v1050, %v1057
        %v1059 = vcombine.high %v1058, %v1058
        %v1061 = vunpack.c.l.s4 1966171168
        %v1062 = vunpack.c.0.s8 %v1061
        %v1063 = vlaneseq
        %v1064 = vshrl.u32 %v1063, 7
        %v1065 = vsub.s32 %v1062, %v1064
        %v1066 = vrot.slane %v1058, %v1065
        %v1068 = vunpack.c.l.s4 1966171168
        %v1069 = vunpack.c.0.s8 %v1068
        %v1070 = vlaneseq
        %v1071 = vshrl.u32 %v1070, 7
        %v1072 = vsub.s32 %v1069, %v1071
        %v1073 = vrot.slane %v1059, %v1072
        %v1074 = vcombine.high %v1066, %v1066
        %v1075 = vcombine.high %v1073, %v1073
        %v1077 = vpack.i.b16 %v1066, %v1066
        %v1079 = vlaneseq
        %v1080 = vshrl.u32 %v1079, 7
        %v1081 = vsub.s32 0, %v1080
        %v1082 = vrot.slane %v1077, %v1081
        %v1084 = vpack.i.b16 %v1073, %v1073
        %v1086 = vlaneseq
        %v1087 = vshrl.u32 %v1086, 7
        %v1088 = vsub.s32 0, %v1087
        %v1089 = vrot.slane %v1084, %v1088
        %v1091 = vpack.i.b16 %v1074, %v1074
        %v1093 = vlaneseq
        %v1094 = vshrl.u32 %v1093, 7
        %v1095 = vsub.s32 0, %v1094
        %v1096 = vrot.slane %v1091, %v1095
        %v1098 = vpack.i.b16 %v1075, %v1075
        %v1100 = vlaneseq
        %v1101 = vshrl.u32 %v1100, 7
        %v1102 = vsub.s32 0, %v1101
        %v1103 = vrot.slane %v1098, %v1102
        %v1104 = vadd.bf16 %v986, %v1082
        %v1105 = vadd.bf16 %v987, %v1089
        %v1106 = vadd.bf16 %v988, %v1096
        %v1107 = vadd.bf16 %v989, %v1103
        %v1108 = vadd.bf16 %v990, %v1082
        %v1109 = vadd.bf16 %v991, %v1089
        %v1110 = vadd.bf16 %v992, %v1096
        %v1111 = vadd.bf16 %v993, %v1103
        %v1112 = vadd.bf16 %v994, %v1082
        %v1113 = vadd.bf16 %v995, %v1089
        %v1114 = vadd.bf16 %v996, %v1096
        %v1115 = vadd.bf16 %v997, %v1103
        %v1116 = vadd.bf16 %v998, %v1082
        %v1117 = vadd.bf16 %v999, %v1089
        %v1118 = vadd.bf16 %v1000, %v1096
        %v1119 = vadd.bf16 %v1001, %v1103
        %v1120 = vadd.bf16 %v1002, %v1082
        %v1121 = vadd.bf16 %v1003, %v1089
        %v1122 = vadd.bf16 %v1004, %v1096
        %v1123 = vadd.bf16 %v1005, %v1103
        %v1124 = vadd.bf16 %v1006, %v1082
        %v1125 = vadd.bf16 %v1007, %v1089
        %v1126 = vadd.bf16 %v1008, %v1096
        %v1127 = vadd.bf16 %v1009, %v1103
        %v1128 = vadd.bf16 %v1010, %v1082
        %v1129 = vadd.bf16 %v1011, %v1089
        %v1130 = vadd.bf16 %v1012, %v1096
        %v1131 = vadd.bf16 %v1013, %v1103
        %v1132 = vadd.bf16 %v1014, %v1082
        %v1133 = vadd.bf16 %v1015, %v1089
        %v1134 = vadd.bf16 %v1016, %v1096
        %v1135 = vadd.bf16 %v1017, %v1103
        %v1136 = vadd.bf16 %v1018, %v1082
        %v1137 = vadd.bf16 %v1019, %v1089
        %v1138 = vadd.bf16 %v1020, %v1096
        %v1139 = vadd.bf16 %v1021, %v1103
        %v1140 = vadd.bf16 %v1022, %v1082
        %v1141 = vadd.bf16 %v1023, %v1089
        %v1142 = vadd.bf16 %v1024, %v1096
        %v1143 = vadd.bf16 %v1025, %v1103
        %v1144 = vadd.bf16 %v1026, %v1082
        %v1145 = vadd.bf16 %v1027, %v1089
        %v1146 = vadd.bf16 %v1028, %v1096
        %v1147 = vadd.bf16 %v1029, %v1103
        %v1148 = vadd.bf16 %v1030, %v1082
        %v1149 = vadd.bf16 %v1031, %v1089
        %v1150 = vadd.bf16 %v1032, %v1096
        %v1151 = vadd.bf16 %v1033, %v1103
        %v1152 = vadd.bf16 %v1034, %v1082
        %v1153 = vadd.bf16 %v1035, %v1089
        %v1154 = vadd.bf16 %v1036, %v1096
        %v1155 = vadd.bf16 %v1037, %v1103
        %v1156 = vadd.bf16 %v1038, %v1082
        %v1157 = vadd.bf16 %v1039, %v1089
        %v1158 = vadd.bf16 %v1040, %v1096
        %v1159 = vadd.bf16 %v1041, %v1103
        %v1160 = vadd.bf16 %v1042, %v1082
        %v1161 = vadd.bf16 %v1043, %v1089
        %v1162 = vadd.bf16 %v1044, %v1096
        %v1163 = vadd.bf16 %v1045, %v1103
        %v1164 = vadd.bf16 %v1046, %v1082
        %v1165 = vadd.bf16 %v1047, %v1089
        %v1166 = vadd.bf16 %v1048, %v1096
        %v1167 = vadd.bf16 %v1049, %v1103
        %v1168 = vmax.bf16 %v1104, 0
        %v1169 = vmax.bf16 %v1105, 0
        %v1170 = vmax.bf16 %v1106, 0
        %v1171 = vmax.bf16 %v1107, 0
        %v1172 = vmax.bf16 %v1108, 0
        %v1173 = vmax.bf16 %v1109, 0
        %v1174 = vmax.bf16 %v1110, 0
        %v1175 = vmax.bf16 %v1111, 0
        %v1176 = vmax.bf16 %v1112, 0
        %v1177 = vmax.bf16 %v1113, 0
        %v1178 = vmax.bf16 %v1114, 0
        %v1179 = vmax.bf16 %v1115, 0
        %v1180 = vmax.bf16 %v1116, 0
        %v1181 = vmax.bf16 %v1117, 0
        %v1182 = vmax.bf16 %v1118, 0
        %v1183 = vmax.bf16 %v1119, 0
        %v1184 = vmax.bf16 %v1120, 0
        %v1185 = vmax.bf16 %v1121, 0
        %v1186 = vmax.bf16 %v1122, 0
        %v1187 = vmax.bf16 %v1123, 0
        %v1188 = vmax.bf16 %v1124, 0
        %v1189 = vmax.bf16 %v1125, 0
        %v1190 = vmax.bf16 %v1126, 0
        %v1191 = vmax.bf16 %v1127, 0
        %v1192 = vmax.bf16 %v1128, 0
        %v1193 = vmax.bf16 %v1129, 0
        %v1194 = vmax.bf16 %v1130, 0
        %v1195 = vmax.bf16 %v1131, 0
        %v1196 = vmax.bf16 %v1132, 0
        %v1197 = vmax.bf16 %v1133, 0
        %v1198 = vmax.bf16 %v1134, 0
        %v1199 = vmax.bf16 %v1135, 0
        %v1200 = vmax.bf16 %v1136, 0
        %v1201 = vmax.bf16 %v1137, 0
        %v1202 = vmax.bf16 %v1138, 0
        %v1203 = vmax.bf16 %v1139, 0
        %v1204 = vmax.bf16 %v1140, 0
        %v1205 = vmax.bf16 %v1141, 0
        %v1206 = vmax.bf16 %v1142, 0
        %v1207 = vmax.bf16 %v1143, 0
        %v1208 = vmax.bf16 %v1144, 0
        %v1209 = vmax.bf16 %v1145, 0
        %v1210 = vmax.bf16 %v1146, 0
        %v1211 = vmax.bf16 %v1147, 0
        %v1212 = vmax.bf16 %v1148, 0
        %v1213 = vmax.bf16 %v1149, 0
        %v1214 = vmax.bf16 %v1150, 0
        %v1215 = vmax.bf16 %v1151, 0
        %v1216 = vmax.bf16 %v1152, 0
        %v1217 = vmax.bf16 %v1153, 0
        %v1218 = vmax.bf16 %v1154, 0
        %v1219 = vmax.bf16 %v1155, 0
        %v1220 = vmax.bf16 %v1156, 0
        %v1221 = vmax.bf16 %v1157, 0
        %v1222 = vmax.bf16 %v1158, 0
        %v1223 = vmax.bf16 %v1159, 0
        %v1224 = vmax.bf16 %v1160, 0
        %v1225 = vmax.bf16 %v1161, 0
        %v1226 = vmax.bf16 %v1162, 0
        %v1227 = vmax.bf16 %v1163, 0
        %v1228 = vmax.bf16 %v1164, 0
        %v1229 = vmax.bf16 %v1165, 0
        %v1230 = vmax.bf16 %v1166, 0
        %v1231 = vmax.bf16 %v1167, 0
        %v1232 = vld [vmem:[%s3] sm:$0xff]
        %v1233 = vld [vmem:[%s3 + $0x8] sm:$0xff]
        %v1234 = vld [vmem:[%s3 + $0x10] sm:$0xff]
        %v1235 = vld [vmem:[%s3 + $0x18] sm:$0xff]
        %v1236 = vld [vmem:[%s3 + $0x20] sm:$0xff]
        %v1237 = vld [vmem:[%s3 + $0x28] sm:$0xff]
        %v1238 = vld [vmem:[%s3 + $0x30] sm:$0xff]
        %v1239 = vld [vmem:[%s3 + $0x38] sm:$0xff]
        %v1240 = vld [vmem:[%s3 + $0x40] sm:$0xff]
        %v1241 = vld [vmem:[%s3 + $0x48] sm:$0xff]
        %v1242 = vld [vmem:[%s3 + $0x50] sm:$0xff]
        %v1243 = vld [vmem:[%s3 + $0x58] sm:$0xff]
        %v1244 = vld [vmem:[%s3 + $0x60] sm:$0xff]
        %v1245 = vld [vmem:[%s3 + $0x68] sm:$0xff]
        %v1246 = vld [vmem:[%s3 + $0x70] sm:$0xff]
        %v1247 = vld [vmem:[%s3 + $0x78] sm:$0xff]
        %v1248 = vld [vmem:[%s3 + $0x80] sm:$0xff]
        %v1249 = vld [vmem:[%s3 + $0x88] sm:$0xff]
        %v1250 = vld [vmem:[%s3 + $0x90] sm:$0xff]
        %v1251 = vld [vmem:[%s3 + $0x98] sm:$0xff]
        %v1252 = vld [vmem:[%s3 + $0xa0] sm:$0xff]
        %v1253 = vld [vmem:[%s3 + $0xa8] sm:$0xff]
        %v1254 = vld [vmem:[%s3 + $0xb0] sm:$0xff]
        %v1255 = vld [vmem:[%s3 + $0xb8] sm:$0xff]
        %v1256 = vld [vmem:[%s3 + $0xc0] sm:$0xff]
        %v1257 = vld [vmem:[%s3 + $0xc8] sm:$0xff]
        %v1258 = vld [vmem:[%s3 + $0xd0] sm:$0xff]
        %v1259 = vld [vmem:[%s3 + $0xd8] sm:$0xff]
        %v1260 = vld [vmem:[%s3 + $0xe0] sm:$0xff]
        %v1261 = vld [vmem:[%s3 + $0xe8] sm:$0xff]
        %v1262 = vld [vmem:[%s3 + $0xf0] sm:$0xff]
        %v1263 = vld [vmem:[%s3 + $0xf8] sm:$0xff]
        %v1264 = vld [vmem:[%s3 + $0x100] sm:$0xff]
        %v1265 = vld [vmem:[%s3 + $0x108] sm:$0xff]
        %v1266 = vld [vmem:[%s3 + $0x110] sm:$0xff]
        %v1267 = vld [vmem:[%s3 + $0x118] sm:$0xff]
        %v1268 = vld [vmem:[%s3 + $0x120] sm:$0xff]
        %v1269 = vld [vmem:[%s3 + $0x128] sm:$0xff]
        %v1270 = vld [vmem:[%s3 + $0x130] sm:$0xff]
        %v1271 = vld [vmem:[%s3 + $0x138] sm:$0xff]
        %v1272 = vld [vmem:[%s3 + $0x140] sm:$0xff]
        %v1273 = vld [vmem:[%s3 + $0x148] sm:$0xff]
        %v1274 = vld [vmem:[%s3 + $0x150] sm:$0xff]
        %v1275 = vld [vmem:[%s3 + $0x158] sm:$0xff]
        %v1276 = vld [vmem:[%s3 + $0x160] sm:$0xff]
        %v1277 = vld [vmem:[%s3 + $0x168] sm:$0xff]
        %v1278 = vld [vmem:[%s3 + $0x170] sm:$0xff]
        %v1279 = vld [vmem:[%s3 + $0x178] sm:$0xff]
        %v1280 = vld [vmem:[%s3 + $0x180] sm:$0xff]
        %v1281 = vld [vmem:[%s3 + $0x188] sm:$0xff]
        %v1282 = vld [vmem:[%s3 + $0x190] sm:$0xff]
        %v1283 = vld [vmem:[%s3 + $0x198] sm:$0xff]
        %v1284 = vld [vmem:[%s3 + $0x1a0] sm:$0xff]
        %v1285 = vld [vmem:[%s3 + $0x1a8] sm:$0xff]
        %v1286 = vld [vmem:[%s3 + $0x1b0] sm:$0xff]
        %v1287 = vld [vmem:[%s3 + $0x1b8] sm:$0xff]
        %v1288 = vld [vmem:[%s3 + $0x1c0] sm:$0xff]
        %v1289 = vld [vmem:[%s3 + $0x1c8] sm:$0xff]
        %v1290 = vld [vmem:[%s3 + $0x1d0] sm:$0xff]
        %v1291 = vld [vmem:[%s3 + $0x1d8] sm:$0xff]
        %v1292 = vld [vmem:[%s3 + $0x1e0] sm:$0xff]
        %v1293 = vld [vmem:[%s3 + $0x1e8] sm:$0xff]
        %v1294 = vld [vmem:[%s3 + $0x1f0] sm:$0xff]
        %v1295 = vld [vmem:[%s3 + $0x1f8] sm:$0xff]
        %v1360 = vunpack.c.l.b16 %v1232
        %v1361 = vunpack.c.h.b16 %v1232
        %v1362 = vunpack.c.l.b16 %v1233
        %v1363 = vunpack.c.h.b16 %v1233
        %v1364 = vunpack.c.l.b16 %v1234
        %v1365 = vunpack.c.h.b16 %v1234
        %v1366 = vunpack.c.l.b16 %v1235
        %v1367 = vunpack.c.h.b16 %v1235
        %v1368 = vunpack.c.l.b16 %v1236
        %v1369 = vunpack.c.h.b16 %v1236
        %v1370 = vunpack.c.l.b16 %v1237
        %v1371 = vunpack.c.h.b16 %v1237
        %v1372 = vunpack.c.l.b16 %v1238
        %v1373 = vunpack.c.h.b16 %v1238
        %v1374 = vunpack.c.l.b16 %v1239
        %v1375 = vunpack.c.h.b16 %v1239
        %v1376 = vunpack.c.l.b16 %v1240
        %v1377 = vunpack.c.h.b16 %v1240
        %v1378 = vunpack.c.l.b16 %v1241
        %v1379 = vunpack.c.h.b16 %v1241
        %v1380 = vunpack.c.l.b16 %v1242
        %v1381 = vunpack.c.h.b16 %v1242
        %v1382 = vunpack.c.l.b16 %v1243
        %v1383 = vunpack.c.h.b16 %v1243
        %v1384 = vunpack.c.l.b16 %v1244
        %v1385 = vunpack.c.h.b16 %v1244
        %v1386 = vunpack.c.l.b16 %v1245
        %v1387 = vunpack.c.h.b16 %v1245
        %v1388 = vunpack.c.l.b16 %v1246
        %v1389 = vunpack.c.h.b16 %v1246
        %v1390 = vunpack.c.l.b16 %v1247
        %v1391 = vunpack.c.h.b16 %v1247
        %v1392 = vunpack.c.l.b16 %v1248
        %v1393 = vunpack.c.h.b16 %v1248
        %v1394 = vunpack.c.l.b16 %v1249
        %v1395 = vunpack.c.h.b16 %v1249
        %v1396 = vunpack.c.l.b16 %v1250
        %v1397 = vunpack.c.h.b16 %v1250
        %v1398 = vunpack.c.l.b16 %v1251
        %v1399 = vunpack.c.h.b16 %v1251
        %v1400 = vunpack.c.l.b16 %v1252
        %v1401 = vunpack.c.h.b16 %v1252
        %v1402 = vunpack.c.l.b16 %v1253
        %v1403 = vunpack.c.h.b16 %v1253
        %v1404 = vunpack.c.l.b16 %v1254
        %v1405 = vunpack.c.h.b16 %v1254
        %v1406 = vunpack.c.l.b16 %v1255
        %v1407 = vunpack.c.h.b16 %v1255
        %v1408 = vunpack.c.l.b16 %v1256
        %v1409 = vunpack.c.h.b16 %v1256
        %v1410 = vunpack.c.l.b16 %v1257
        %v1411 = vunpack.c.h.b16 %v1257
        %v1412 = vunpack.c.l.b16 %v1258
        %v1413 = vunpack.c.h.b16 %v1258
        %v1414 = vunpack.c.l.b16 %v1259
        %v1415 = vunpack.c.h.b16 %v1259
        %v1416 = vunpack.c.l.b16 %v1260
        %v1417 = vunpack.c.h.b16 %v1260
        %v1418 = vunpack.c.l.b16 %v1261
        %v1419 = vunpack.c.h.b16 %v1261
        %v1420 = vunpack.c.l.b16 %v1262
        %v1421 = vunpack.c.h.b16 %v1262
        %v1422 = vunpack.c.l.b16 %v1263
        %v1423 = vunpack.c.h.b16 %v1263
        %v1424 = vunpack.c.l.b16 %v1264
        %v1425 = vunpack.c.h.b16 %v1264
        %v1426 = vunpack.c.l.b16 %v1265
        %v1427 = vunpack.c.h.b16 %v1265
        %v1428 = vunpack.c.l.b16 %v1266
        %v1429 = vunpack.c.h.b16 %v1266
        %v1430 = vunpack.c.l.b16 %v1267
        %v1431 = vunpack.c.h.b16 %v1267
        %v1432 = vunpack.c.l.b16 %v1268
        %v1433 = vunpack.c.h.b16 %v1268
        %v1434 = vunpack.c.l.b16 %v1269
        %v1435 = vunpack.c.h.b16 %v1269
        %v1436 = vunpack.c.l.b16 %v1270
        %v1437 = vunpack.c.h.b16 %v1270
        %v1438 = vunpack.c.l.b16 %v1271
        %v1439 = vunpack.c.h.b16 %v1271
        %v1440 = vunpack.c.l.b16 %v1272
        %v1441 = vunpack.c.h.b16 %v1272
        %v1442 = vunpack.c.l.b16 %v1273
        %v1443 = vunpack.c.h.b16 %v1273
        %v1444 = vunpack.c.l.b16 %v1274
        %v1445 = vunpack.c.h.b16 %v1274
        %v1446 = vunpack.c.l.b16 %v1275
        %v1447 = vunpack.c.h.b16 %v1275
        %v1448 = vunpack.c.l.b16 %v1276
        %v1449 = vunpack.c.h.b16 %v1276
        %v1450 = vunpack.c.l.b16 %v1277
        %v1451 = vunpack.c.h.b16 %v1277
        %v1452 = vunpack.c.l.b16 %v1278
        %v1453 = vunpack.c.h.b16 %v1278
        %v1454 = vunpack.c.l.b16 %v1279
        %v1455 = vunpack.c.h.b16 %v1279
        %v1456 = vunpack.c.l.b16 %v1280
        %v1457 = vunpack.c.h.b16 %v1280
        %v1458 = vunpack.c.l.b16 %v1281
        %v1459 = vunpack.c.h.b16 %v1281
        %v1460 = vunpack.c.l.b16 %v1282
        %v1461 = vunpack.c.h.b16 %v1282
        %v1462 = vunpack.c.l.b16 %v1283
        %v1463 = vunpack.c.h.b16 %v1283
        %v1464 = vunpack.c.l.b16 %v1284
        %v1465 = vunpack.c.h.b16 %v1284
        %v1466 = vunpack.c.l.b16 %v1285
        %v1467 = vunpack.c.h.b16 %v1285
        %v1468 = vunpack.c.l.b16 %v1286
        %v1469 = vunpack.c.h.b16 %v1286
        %v1470 = vunpack.c.l.b16 %v1287
        %v1471 = vunpack.c.h.b16 %v1287
        %v1472 = vunpack.c.l.b16 %v1288
        %v1473 = vunpack.c.h.b16 %v1288
        %v1474 = vunpack.c.l.b16 %v1289
        %v1475 = vunpack.c.h.b16 %v1289
        %v1476 = vunpack.c.l.b16 %v1290
        %v1477 = vunpack.c.h.b16 %v1290
        %v1478 = vunpack.c.l.b16 %v1291
        %v1479 = vunpack.c.h.b16 %v1291
        %v1480 = vunpack.c.l.b16 %v1292
        %v1481 = vunpack.c.h.b16 %v1292
        %v1482 = vunpack.c.l.b16 %v1293
        %v1483 = vunpack.c.h.b16 %v1293
        %v1484 = vunpack.c.l.b16 %v1294
        %v1485 = vunpack.c.h.b16 %v1294
        %v1486 = vunpack.c.l.b16 %v1295
        %v1487 = vunpack.c.h.b16 %v1295
        %v1488 = vpack.c.b16 %v1362, %v1360
        %v1489 = vpack.c.b16 %v1363, %v1361
        %v1490 = vpack.c.b16 %v1366, %v1364
        %v1491 = vpack.c.b16 %v1367, %v1365
        %v1492 = vpack.c.b16 %v1370, %v1368
        %v1493 = vpack.c.b16 %v1371, %v1369
        %v1494 = vpack.c.b16 %v1374, %v1372
        %v1495 = vpack.c.b16 %v1375, %v1373
        %v1496 = vpack.c.b16 %v1378, %v1376
        %v1497 = vpack.c.b16 %v1379, %v1377
        %v1498 = vpack.c.b16 %v1382, %v1380
        %v1499 = vpack.c.b16 %v1383, %v1381
        %v1500 = vpack.c.b16 %v1386, %v1384
        %v1501 = vpack.c.b16 %v1387, %v1385
        %v1502 = vpack.c.b16 %v1390, %v1388
        %v1503 = vpack.c.b16 %v1391, %v1389
        %v1504 = vpack.c.b16 %v1394, %v1392
        %v1505 = vpack.c.b16 %v1395, %v1393
        %v1506 = vpack.c.b16 %v1398, %v1396
        %v1507 = vpack.c.b16 %v1399, %v1397
        %v1508 = vpack.c.b16 %v1402, %v1400
        %v1509 = vpack.c.b16 %v1403, %v1401
        %v1510 = vpack.c.b16 %v1406, %v1404
        %v1511 = vpack.c.b16 %v1407, %v1405
        %v1512 = vpack.c.b16 %v1410, %v1408
        %v1513 = vpack.c.b16 %v1411, %v1409
        %v1514 = vpack.c.b16 %v1414, %v1412
        %v1515 = vpack.c.b16 %v1415, %v1413
        %v1516 = vpack.c.b16 %v1418, %v1416
        %v1517 = vpack.c.b16 %v1419, %v1417
        %v1518 = vpack.c.b16 %v1422, %v1420
        %v1519 = vpack.c.b16 %v1423, %v1421
        %v1520 = vpack.c.b16 %v1426, %v1424
        %v1521 = vpack.c.b16 %v1427, %v1425
        %v1522 = vpack.c.b16 %v1430, %v1428
        %v1523 = vpack.c.b16 %v1431, %v1429
        %v1524 = vpack.c.b16 %v1434, %v1432
        %v1525 = vpack.c.b16 %v1435, %v1433
        %v1526 = vpack.c.b16 %v1438, %v1436
        %v1527 = vpack.c.b16 %v1439, %v1437
        %v1528 = vpack.c.b16 %v1442, %v1440
        %v1529 = vpack.c.b16 %v1443, %v1441
        %v1530 = vpack.c.b16 %v1446, %v1444
        %v1531 = vpack.c.b16 %v1447, %v1445
        %v1532 = vpack.c.b16 %v1450, %v1448
        %v1533 = vpack.c.b16 %v1451, %v1449
        %v1534 = vpack.c.b16 %v1454, %v1452
        %v1535 = vpack.c.b16 %v1455, %v1453
        %v1536 = vpack.c.b16 %v1458, %v1456
        %v1537 = vpack.c.b16 %v1459, %v1457
        %v1538 = vpack.c.b16 %v1462, %v1460
        %v1539 = vpack.c.b16 %v1463, %v1461
        %v1540 = vpack.c.b16 %v1466, %v1464
        %v1541 = vpack.c.b16 %v1467, %v1465
        %v1542 = vpack.c.b16 %v1470, %v1468
        %v1543 = vpack.c.b16 %v1471, %v1469
        %v1544 = vpack.c.b16 %v1474, %v1472
        %v1545 = vpack.c.b16 %v1475, %v1473
        %v1546 = vpack.c.b16 %v1478, %v1476
        %v1547 = vpack.c.b16 %v1479, %v1477
        %v1548 = vpack.c.b16 %v1482, %v1480
        %v1549 = vpack.c.b16 %v1483, %v1481
        %v1550 = vpack.c.b16 %v1486, %v1484
        %v1551 = vpack.c.b16 %v1487, %v1485
        %1616 = vmatprep.subr.bf16.mxu0 %v1489
        %1617 = vmatpush1.bf16.msra.mxu0 %v1488
        %1618 = vmatprep.subr.bf16.mxu0 %v1491
        %1619 = vmatpush1.bf16.msra.mxu0 %v1490
        %1620 = vmatprep.subr.bf16.mxu0 %v1493
        %1621 = vmatpush1.bf16.msra.mxu0 %v1492
        %1622 = vmatprep.subr.bf16.mxu0 %v1495
        %1623 = vmatpush1.bf16.msra.mxu0 %v1494
        %1624 = vmatprep.subr.bf16.mxu0 %v1497
        %1625 = vmatpush1.bf16.msra.mxu0 %v1496
        %1626 = vmatprep.subr.bf16.mxu0 %v1499
        %1627 = vmatpush1.bf16.msra.mxu0 %v1498
        %1628 = vmatprep.subr.bf16.mxu0 %v1501
        %1629 = vmatpush1.bf16.msra.mxu0 %v1500
        %1630 = vmatprep.subr.bf16.mxu0 %v1503
        %1631 = vmatpush1.bf16.msra.mxu0 %v1502
        %1632 = vmatprep.subr.bf16.mxu0 %v1505
        %1633 = vmatpush1.bf16.msra.mxu0 %v1504
        %1634 = vmatprep.subr.bf16.mxu0 %v1507
        %1635 = vmatpush1.bf16.msra.mxu0 %v1506
        %1636 = vmatprep.subr.bf16.mxu0 %v1509
        %1637 = vmatpush1.bf16.msra.mxu0 %v1508
        %1638 = vmatprep.subr.bf16.mxu0 %v1511
        %1639 = vmatpush1.bf16.msra.mxu0 %v1510
        %1640 = vmatprep.subr.bf16.mxu0 %v1513
        %1641 = vmatpush1.bf16.msra.mxu0 %v1512
        %1642 = vmatprep.subr.bf16.mxu0 %v1515
        %1643 = vmatpush1.bf16.msra.mxu0 %v1514
        %1644 = vmatprep.subr.bf16.mxu0 %v1517
        %1645 = vmatpush1.bf16.msra.mxu0 %v1516
        %1646 = vmatprep.subr.bf16.mxu0 %v1519
        %1647 = vmatpush1.bf16.msra.mxu0 %v1518
        %1648 = vmatprep.mubr.bf16.mxu0 %v1169
        %1649 = vmatmul.mubr.bf16.gmra.mrb[0].mxu0 %v1168
        %v1650 = vpop.f32.mrb[0].mxu0
        %v1651 = vadd.f32 0.0, %v1650
        %v1652 = vpop.f32.mrb[0].mxu0
        %v1653 = vadd.f32 0.0, %v1652
        %v1654 = vpop.f32.mrb[0].mxu0
        %v1655 = vadd.f32 0.0, %v1654
        %v1656 = vpop.f32.mrb[0].mxu0
        %v1657 = vadd.f32 0.0, %v1656
        %1658 = vmatprep.mubr.bf16.mxu0 %v1173
        %1659 = vmatmul.mubr.bf16.gmra.mrb[0].mxu0 %v1172
        %v1660 = vpop.f32.mrb[0].mxu0
        %v1661 = vadd.f32 0.0, %v1660
        %v1662 = vpop.f32.mrb[0].mxu0
        %v1663 = vadd.f32 0.0, %v1662
        %v1664 = vpop.f32.mrb[0].mxu0
        %v1665 = vadd.f32 0.0, %v1664
        %v1666 = vpop.f32.mrb[0].mxu0
        %v1667 = vadd.f32 0.0, %v1666
        %1668 = vmatprep.mubr.bf16.mxu0 %v1177
        %1669 = vmatmul.mubr.bf16.gmra.mrb[0].mxu0 %v1176
        %v1670 = vpop.f32.mrb[0].mxu0
        %v1671 = vadd.f32 0.0, %v1670
        %v1672 = vpop.f32.mrb[0].mxu0
        %v1673 = vadd.f32 0.0, %v1672
        %v1674 = vpop.f32.mrb[0].mxu0
        %v1675 = vadd.f32 0.0, %v1674
        %v1676 = vpop.f32.mrb[0].mxu0
        %v1677 = vadd.f32 0.0, %v1676
        %1678 = vmatprep.mubr.bf16.mxu0 %v1181
        %1679 = vmatmul.mubr.bf16.gmra.mrb[0].mxu0 %v1180
        %v1680 = vpop.f32.mrb[0].mxu0
        %v1681 = vadd.f32 0.0, %v1680
        %v1682 = vpop.f32.mrb[0].mxu0
        %v1683 = vadd.f32 0.0, %v1682
        %v1684 = vpop.f32.mrb[0].mxu0
        %v1685 = vadd.f32 0.0, %v1684
        %v1686 = vpop.f32.mrb[0].mxu0
        %v1687 = vadd.f32 0.0, %v1686
        %1688 = vmatprep.mubr.bf16.mxu0 %v1185
        %1689 = vmatmul.mubr.bf16.gmra.mrb[0].mxu0 %v1184
        %v1690 = vpop.f32.mrb[0].mxu0
        %v1691 = vadd.f32 0.0, %v1690
        %v1692 = vpop.f32.mrb[0].mxu0
        %v1693 = vadd.f32 0.0, %v1692
        %v1694 = vpop.f32.mrb[0].mxu0
        %v1695 = vadd.f32 0.0, %v1694
        %v1696 = vpop.f32.mrb[0].mxu0
        %v1697 = vadd.f32 0.0, %v1696
        %1698 = vmatprep.mubr.bf16.mxu0 %v1189
        %1699 = vmatmul.mubr.bf16.gmra.mrb[0].mxu0 %v1188
        %v1700 = vpop.f32.mrb[0].mxu0
        %v1701 = vadd.f32 0.0, %v1700
        %v1702 = vpop.f32.mrb[0].mxu0
        %v1703 = vadd.f32 0.0, %v1702
        %v1704 = vpop.f32.mrb[0].mxu0
        %v1705 = vadd.f32 0.0, %v1704
        %v1706 = vpop.f32.mrb[0].mxu0
        %v1707 = vadd.f32 0.0, %v1706
        %1708 = vmatprep.mubr.bf16.mxu0 %v1193
        %1709 = vmatmul.mubr.bf16.gmra.mrb[0].mxu0 %v1192
        %v1710 = vpop.f32.mrb[0].mxu0
        %v1711 = vadd.f32 0.0, %v1710
        %v1712 = vpop.f32.mrb[0].mxu0
        %v1713 = vadd.f32 0.0, %v1712
        %v1714 = vpop.f32.mrb[0].mxu0
        %v1715 = vadd.f32 0.0, %v1714
        %v1716 = vpop.f32.mrb[0].mxu0
        %v1717 = vadd.f32 0.0, %v1716
        %1718 = vmatprep.mubr.bf16.mxu0 %v1197
        %1719 = vmatmul.mubr.bf16.gmra.mrb[0].mxu0 %v1196
        %v1720 = vpop.f32.mrb[0].mxu0
        %v1721 = vadd.f32 0.0, %v1720
        %v1722 = vpop.f32.mrb[0].mxu0
        %v1723 = vadd.f32 0.0, %v1722
        %v1724 = vpop.f32.mrb[0].mxu0
        %v1725 = vadd.f32 0.0, %v1724
        %v1726 = vpop.f32.mrb[0].mxu0
        %v1727 = vadd.f32 0.0, %v1726
        %1728 = vmatprep.mubr.bf16.mxu0 %v1201
        %1729 = vmatmul.mubr.bf16.gmra.mrb[0].mxu0 %v1200
        %v1730 = vpop.f32.mrb[0].mxu0
        %v1731 = vadd.f32 0.0, %v1730
        %v1732 = vpop.f32.mrb[0].mxu0
        %v1733 = vadd.f32 0.0, %v1732
        %v1734 = vpop.f32.mrb[0].mxu0
        %v1735 = vadd.f32 0.0, %v1734
        %v1736 = vpop.f32.mrb[0].mxu0
        %v1737 = vadd.f32 0.0, %v1736
        %1738 = vmatprep.mubr.bf16.mxu0 %v1205
        %1739 = vmatmul.mubr.bf16.gmra.mrb[0].mxu0 %v1204
        %v1740 = vpop.f32.mrb[0].mxu0
        %v1741 = vadd.f32 0.0, %v1740
        %v1742 = vpop.f32.mrb[0].mxu0
        %v1743 = vadd.f32 0.0, %v1742
        %v1744 = vpop.f32.mrb[0].mxu0
        %v1745 = vadd.f32 0.0, %v1744
        %v1746 = vpop.f32.mrb[0].mxu0
        %v1747 = vadd.f32 0.0, %v1746
        %1748 = vmatprep.mubr.bf16.mxu0 %v1209
        %1749 = vmatmul.mubr.bf16.gmra.mrb[0].mxu0 %v1208
        %v1750 = vpop.f32.mrb[0].mxu0
        %v1751 = vadd.f32 0.0, %v1750
        %v1752 = vpop.f32.mrb[0].mxu0
        %v1753 = vadd.f32 0.0, %v1752
        %v1754 = vpop.f32.mrb[0].mxu0
        %v1755 = vadd.f32 0.0, %v1754
        %v1756 = vpop.f32.mrb[0].mxu0
        %v1757 = vadd.f32 0.0, %v1756
        %1758 = vmatprep.mubr.bf16.mxu0 %v1213
        %1759 = vmatmul.mubr.bf16.gmra.mrb[0].mxu0 %v1212
        %v1760 = vpop.f32.mrb[0].mxu0
        %v1761 = vadd.f32 0.0, %v1760
        %v1762 = vpop.f32.mrb[0].mxu0
        %v1763 = vadd.f32 0.0, %v1762
        %v1764 = vpop.f32.mrb[0].mxu0
        %v1765 = vadd.f32 0.0, %v1764
        %v1766 = vpop.f32.mrb[0].mxu0
        %v1767 = vadd.f32 0.0, %v1766
        %1768 = vmatprep.mubr.bf16.mxu0 %v1217
        %1769 = vmatmul.mubr.bf16.gmra.mrb[0].mxu0 %v1216
        %v1770 = vpop.f32.mrb[0].mxu0
        %v1771 = vadd.f32 0.0, %v1770
        %v1772 = vpop.f32.mrb[0].mxu0
        %v1773 = vadd.f32 0.0, %v1772
        %v1774 = vpop.f32.mrb[0].mxu0
        %v1775 = vadd.f32 0.0, %v1774
        %v1776 = vpop.f32.mrb[0].mxu0
        %v1777 = vadd.f32 0.0, %v1776
        %1778 = vmatprep.mubr.bf16.mxu0 %v1221
        %1779 = vmatmul.mubr.bf16.gmra.mrb[0].mxu0 %v1220
        %v1780 = vpop.f32.mrb[0].mxu0
        %v1781 = vadd.f32 0.0, %v1780
        %v1782 = vpop.f32.mrb[0].mxu0
        %v1783 = vadd.f32 0.0, %v1782
        %v1784 = vpop.f32.mrb[0].mxu0
        %v1785 = vadd.f32 0.0, %v1784
        %v1786 = vpop.f32.mrb[0].mxu0
        %v1787 = vadd.f32 0.0, %v1786
        %1788 = vmatprep.mubr.bf16.mxu0 %v1225
        %1789 = vmatmul.mubr.bf16.gmra.mrb[0].mxu0 %v1224
        %v1790 = vpop.f32.mrb[0].mxu0
        %v1791 = vadd.f32 0.0, %v1790
        %v1792 = vpop.f32.mrb[0].mxu0
        %v1793 = vadd.f32 0.0, %v1792
        %v1794 = vpop.f32.mrb[0].mxu0
        %v1795 = vadd.f32 0.0, %v1794
        %v1796 = vpop.f32.mrb[0].mxu0
        %v1797 = vadd.f32 0.0, %v1796
        %1798 = vmatprep.mubr.bf16.mxu0 %v1229
        %1799 = vmatmul.mubr.bf16.gmra.mrb[0].mxu0 %v1228
        %v1800 = vpop.f32.mrb[0].mxu0
        %v1801 = vadd.f32 0.0, %v1800
        %v1802 = vpop.f32.mrb[0].mxu0
        %v1803 = vadd.f32 0.0, %v1802
        %v1804 = vpop.f32.mrb[0].mxu0
        %v1805 = vadd.f32 0.0, %v1804
        %v1806 = vpop.f32.mrb[0].mxu0
        %v1807 = vadd.f32 0.0, %v1806
        %1808 = vdwg.mxu0
        %1809 = vmatprep.subr.bf16.mxu0 %v1521
        %1810 = vmatpush1.bf16.msra.mxu0 %v1520
        %1811 = vmatprep.subr.bf16.mxu0 %v1523
        %1812 = vmatpush1.bf16.msra.mxu0 %v1522
        %1813 = vmatprep.subr.bf16.mxu0 %v1525
        %1814 = vmatpush1.bf16.msra.mxu0 %v1524
        %1815 = vmatprep.subr.bf16.mxu0 %v1527
        %1816 = vmatpush1.bf16.msra.mxu0 %v1526
        %1817 = vmatprep.subr.bf16.mxu0 %v1529
        %1818 = vmatpush1.bf16.msra.mxu0 %v1528
        %1819 = vmatprep.subr.bf16.mxu0 %v1531
        %1820 = vmatpush1.bf16.msra.mxu0 %v1530
        %1821 = vmatprep.subr.bf16.mxu0 %v1533
        %1822 = vmatpush1.bf16.msra.mxu0 %v1532
        %1823 = vmatprep.subr.bf16.mxu0 %v1535
        %1824 = vmatpush1.bf16.msra.mxu0 %v1534
        %1825 = vmatprep.subr.bf16.mxu0 %v1537
        %1826 = vmatpush1.bf16.msra.mxu0 %v1536
        %1827 = vmatprep.subr.bf16.mxu0 %v1539
        %1828 = vmatpush1.bf16.msra.mxu0 %v1538
        %1829 = vmatprep.subr.bf16.mxu0 %v1541
        %1830 = vmatpush1.bf16.msra.mxu0 %v1540
        %1831 = vmatprep.subr.bf16.mxu0 %v1543
        %1832 = vmatpush1.bf16.msra.mxu0 %v1542
        %1833 = vmatprep.subr.bf16.mxu0 %v1545
        %1834 = vmatpush1.bf16.msra.mxu0 %v1544
        %1835 = vmatprep.subr.bf16.mxu0 %v1547
        %1836 = vmatpush1.bf16.msra.mxu0 %v1546
        %1837 = vmatprep.subr.bf16.mxu0 %v1549
        %1838 = vmatpush1.bf16.msra.mxu0 %v1548
        %1839 = vmatprep.subr.bf16.mxu0 %v1551
        %1840 = vmatpush1.bf16.msra.mxu0 %v1550
        %1841 = vmatprep.mubr.bf16.mxu0 %v1171
        %1842 = vmatmul.mubr.bf16.gmra.mrb[0].mxu0 %v1170
        %v1843 = vpop.f32.mrb[0].mxu0
        %v1844 = vadd.f32 %v1651, %v1843
        %v1845 = vpop.f32.mrb[0].mxu0
        %v1846 = vadd.f32 %v1653, %v1845
        %v1847 = vpop.f32.mrb[0].mxu0
        %v1848 = vadd.f32 %v1655, %v1847
        %v1849 = vpop.f32.mrb[0].mxu0
        %v1850 = vadd.f32 %v1657, %v1849
        %1851 = vmatprep.mubr.bf16.mxu0 %v1175
        %1852 = vmatmul.mubr.bf16.gmra.mrb[0].mxu0 %v1174
        %v1853 = vpop.f32.mrb[0].mxu0
        %v1854 = vadd.f32 %v1661, %v1853
        %v1855 = vpop.f32.mrb[0].mxu0
        %v1856 = vadd.f32 %v1663, %v1855
        %v1857 = vpop.f32.mrb[0].mxu0
        %v1858 = vadd.f32 %v1665, %v1857
        %v1859 = vpop.f32.mrb[0].mxu0
        %v1860 = vadd.f32 %v1667, %v1859
        %1861 = vmatprep.mubr.bf16.mxu0 %v1179
        %1862 = vmatmul.mubr.bf16.gmra.mrb[0].mxu0 %v1178
        %v1863 = vpop.f32.mrb[0].mxu0
        %v1864 = vadd.f32 %v1671, %v1863
        %v1865 = vpop.f32.mrb[0].mxu0
        %v1866 = vadd.f32 %v1673, %v1865
        %v1867 = vpop.f32.mrb[0].mxu0
        %v1868 = vadd.f32 %v1675, %v1867
        %v1869 = vpop.f32.mrb[0].mxu0
        %v1870 = vadd.f32 %v1677, %v1869
        %1871 = vmatprep.mubr.bf16.mxu0 %v1183
        %1872 = vmatmul.mubr.bf16.gmra.mrb[0].mxu0 %v1182
        %v1873 = vpop.f32.mrb[0].mxu0
        %v1874 = vadd.f32 %v1681, %v1873
        %v1875 = vpop.f32.mrb[0].mxu0
        %v1876 = vadd.f32 %v1683, %v1875
        %v1877 = vpop.f32.mrb[0].mxu0
        %v1878 = vadd.f32 %v1685, %v1877
        %v1879 = vpop.f32.mrb[0].mxu0
        %v1880 = vadd.f32 %v1687, %v1879
        %1881 = vmatprep.mubr.bf16.mxu0 %v1187
        %1882 = vmatmul.mubr.bf16.gmra.mrb[0].mxu0 %v1186
        %v1883 = vpop.f32.mrb[0].mxu0
        %v1884 = vadd.f32 %v1691, %v1883
        %v1885 = vpop.f32.mrb[0].mxu0
        %v1886 = vadd.f32 %v1693, %v1885
        %v1887 = vpop.f32.mrb[0].mxu0
        %v1888 = vadd.f32 %v1695, %v1887
        %v1889 = vpop.f32.mrb[0].mxu0
        %v1890 = vadd.f32 %v1697, %v1889
        %1891 = vmatprep.mubr.bf16.mxu0 %v1191
        %1892 = vmatmul.mubr.bf16.gmra.mrb[0].mxu0 %v1190
        %v1893 = vpop.f32.mrb[0].mxu0
        %v1894 = vadd.f32 %v1701, %v1893
        %v1895 = vpop.f32.mrb[0].mxu0
        %v1896 = vadd.f32 %v1703, %v1895
        %v1897 = vpop.f32.mrb[0].mxu0
        %v1898 = vadd.f32 %v1705, %v1897
        %v1899 = vpop.f32.mrb[0].mxu0
        %v1900 = vadd.f32 %v1707, %v1899
        %1901 = vmatprep.mubr.bf16.mxu0 %v1195
        %1902 = vmatmul.mubr.bf16.gmra.mrb[0].mxu0 %v1194
        %v1903 = vpop.f32.mrb[0].mxu0
        %v1904 = vadd.f32 %v1711, %v1903
        %v1905 = vpop.f32.mrb[0].mxu0
        %v1906 = vadd.f32 %v1713, %v1905
        %v1907 = vpop.f32.mrb[0].mxu0
        %v1908 = vadd.f32 %v1715, %v1907
        %v1909 = vpop.f32.mrb[0].mxu0
        %v1910 = vadd.f32 %v1717, %v1909
        %1911 = vmatprep.mubr.bf16.mxu0 %v1199
        %1912 = vmatmul.mubr.bf16.gmra.mrb[0].mxu0 %v1198
        %v1913 = vpop.f32.mrb[0].mxu0
        %v1914 = vadd.f32 %v1721, %v1913
        %v1915 = vpop.f32.mrb[0].mxu0
        %v1916 = vadd.f32 %v1723, %v1915
        %v1917 = vpop.f32.mrb[0].mxu0
        %v1918 = vadd.f32 %v1725, %v1917
        %v1919 = vpop.f32.mrb[0].mxu0
        %v1920 = vadd.f32 %v1727, %v1919
        %1921 = vmatprep.mubr.bf16.mxu0 %v1203
        %1922 = vmatmul.mubr.bf16.gmra.mrb[0].mxu0 %v1202
        %v1923 = vpop.f32.mrb[0].mxu0
        %v1924 = vadd.f32 %v1731, %v1923
        %v1925 = vpop.f32.mrb[0].mxu0
        %v1926 = vadd.f32 %v1733, %v1925
        %v1927 = vpop.f32.mrb[0].mxu0
        %v1928 = vadd.f32 %v1735, %v1927
        %v1929 = vpop.f32.mrb[0].mxu0
        %v1930 = vadd.f32 %v1737, %v1929
        %1931 = vmatprep.mubr.bf16.mxu0 %v1207
        %1932 = vmatmul.mubr.bf16.gmra.mrb[0].mxu0 %v1206
        %v1933 = vpop.f32.mrb[0].mxu0
        %v1934 = vadd.f32 %v1741, %v1933
        %v1935 = vpop.f32.mrb[0].mxu0
        %v1936 = vadd.f32 %v1743, %v1935
        %v1937 = vpop.f32.mrb[0].mxu0
        %v1938 = vadd.f32 %v1745, %v1937
        %v1939 = vpop.f32.mrb[0].mxu0
        %v1940 = vadd.f32 %v1747, %v1939
        %1941 = vmatprep.mubr.bf16.mxu0 %v1211
        %1942 = vmatmul.mubr.bf16.gmra.mrb[0].mxu0 %v1210
        %v1943 = vpop.f32.mrb[0].mxu0
        %v1944 = vadd.f32 %v1751, %v1943
        %v1945 = vpop.f32.mrb[0].mxu0
        %v1946 = vadd.f32 %v1753, %v1945
        %v1947 = vpop.f32.mrb[0].mxu0
        %v1948 = vadd.f32 %v1755, %v1947
        %v1949 = vpop.f32.mrb[0].mxu0
        %v1950 = vadd.f32 %v1757, %v1949
        %1951 = vmatprep.mubr.bf16.mxu0 %v1215
        %1952 = vmatmul.mubr.bf16.gmra.mrb[0].mxu0 %v1214
        %v1953 = vpop.f32.mrb[0].mxu0
        %v1954 = vadd.f32 %v1761, %v1953
        %v1955 = vpop.f32.mrb[0].mxu0
        %v1956 = vadd.f32 %v1763, %v1955
        %v1957 = vpop.f32.mrb[0].mxu0
        %v1958 = vadd.f32 %v1765, %v1957
        %v1959 = vpop.f32.mrb[0].mxu0
        %v1960 = vadd.f32 %v1767, %v1959
        %1961 = vmatprep.mubr.bf16.mxu0 %v1219
        %1962 = vmatmul.mubr.bf16.gmra.mrb[0].mxu0 %v1218
        %v1963 = vpop.f32.mrb[0].mxu0
        %v1964 = vadd.f32 %v1771, %v1963
        %v1965 = vpop.f32.mrb[0].mxu0
        %v1966 = vadd.f32 %v1773, %v1965
        %v1967 = vpop.f32.mrb[0].mxu0
        %v1968 = vadd.f32 %v1775, %v1967
        %v1969 = vpop.f32.mrb[0].mxu0
        %v1970 = vadd.f32 %v1777, %v1969
        %1971 = vmatprep.mubr.bf16.mxu0 %v1223
        %1972 = vmatmul.mubr.bf16.gmra.mrb[0].mxu0 %v1222
        %v1973 = vpop.f32.mrb[0].mxu0
        %v1974 = vadd.f32 %v1781, %v1973
        %v1975 = vpop.f32.mrb[0].mxu0
        %v1976 = vadd.f32 %v1783, %v1975
        %v1977 = vpop.f32.mrb[0].mxu0
        %v1978 = vadd.f32 %v1785, %v1977
        %v1979 = vpop.f32.mrb[0].mxu0
        %v1980 = vadd.f32 %v1787, %v1979
        %1981 = vmatprep.mubr.bf16.mxu0 %v1227
        %1982 = vmatmul.mubr.bf16.gmra.mrb[0].mxu0 %v1226
        %v1983 = vpop.f32.mrb[0].mxu0
        %v1984 = vadd.f32 %v1791, %v1983
        %v1985 = vpop.f32.mrb[0].mxu0
        %v1986 = vadd.f32 %v1793, %v1985
        %v1987 = vpop.f32.mrb[0].mxu0
        %v1988 = vadd.f32 %v1795, %v1987
        %v1989 = vpop.f32.mrb[0].mxu0
        %v1990 = vadd.f32 %v1797, %v1989
        %1991 = vmatprep.mubr.bf16.mxu0 %v1231
        %1992 = vmatmul.mubr.bf16.gmra.mrb[0].mxu0 %v1230
        %v1993 = vpop.f32.mrb[0].mxu0
        %v1994 = vadd.f32 %v1801, %v1993
        %v1995 = vpop.f32.mrb[0].mxu0
        %v1996 = vadd.f32 %v1803, %v1995
        %v1997 = vpop.f32.mrb[0].mxu0
        %v1998 = vadd.f32 %v1805, %v1997
        %v1999 = vpop.f32.mrb[0].mxu0
        %v2000 = vadd.f32 %v1807, %v1999
        %2001 = vdwg.mxu0
        %v2002 = vpack.c.bf16 %v1848, %v1844
        %v2003 = vpack.c.bf16 %v1850, %v1846
        %v2004 = vpack.c.bf16 %v1858, %v1854
        %v2005 = vpack.c.bf16 %v1860, %v1856
        %v2006 = vpack.c.bf16 %v1868, %v1864
        %v2007 = vpack.c.bf16 %v1870, %v1866
        %v2008 = vpack.c.bf16 %v1878, %v1874
        %v2009 = vpack.c.bf16 %v1880, %v1876
        %v2010 = vpack.c.bf16 %v1888, %v1884
        %v2011 = vpack.c.bf16 %v1890, %v1886
        %v2012 = vpack.c.bf16 %v1898, %v1894
        %v2013 = vpack.c.bf16 %v1900, %v1896
        %v2014 = vpack.c.bf16 %v1908, %v1904
        %v2015 = vpack.c.bf16 %v1910, %v1906
        %v2016 = vpack.c.bf16 %v1918, %v1914
        %v2017 = vpack.c.bf16 %v1920, %v1916
        %v2018 = vpack.c.bf16 %v1928, %v1924
        %v2019 = vpack.c.bf16 %v1930, %v1926
        %v2020 = vpack.c.bf16 %v1938, %v1934
        %v2021 = vpack.c.bf16 %v1940, %v1936
        %v2022 = vpack.c.bf16 %v1948, %v1944
        %v2023 = vpack.c.bf16 %v1950, %v1946
        %v2024 = vpack.c.bf16 %v1958, %v1954
        %v2025 = vpack.c.bf16 %v1960, %v1956
        %v2026 = vpack.c.bf16 %v1968, %v1964
        %v2027 = vpack.c.bf16 %v1970, %v1966
        %v2028 = vpack.c.bf16 %v1978, %v1974
        %v2029 = vpack.c.bf16 %v1980, %v1976
        %v2030 = vpack.c.bf16 %v1988, %v1984
        %v2031 = vpack.c.bf16 %v1990, %v1986
        %v2032 = vpack.c.bf16 %v1998, %v1994
        %v2033 = vpack.c.bf16 %v2000, %v1996
        %v2034 = vld [vmem:[%s4] sm:$0x3]
        %v2037 = vunpack.c.l.s4 1966171168
        %v2038 = vunpack.c.0.s8 %v2037
        %v2039 = vlaneseq
        %v2040 = vshrl.u32 %v2039, 7
        %v2041 = vsub.s32 %v2038, %v2040
        %v2042 = vrot.slane %v2034, %v2041
        %v2043 = vcombine.high %v2042, %v2042
        %v2045 = vunpack.c.l.s4 1966171168
        %v2046 = vunpack.c.0.s8 %v2045
        %v2047 = vlaneseq
        %v2048 = vshrl.u32 %v2047, 7
        %v2049 = vsub.s32 %v2046, %v2048
        %v2050 = vrot.slane %v2042, %v2049
        %v2052 = vunpack.c.l.s4 1966171168
        %v2053 = vunpack.c.0.s8 %v2052
        %v2054 = vlaneseq
        %v2055 = vshrl.u32 %v2054, 7
        %v2056 = vsub.s32 %v2053, %v2055
        %v2057 = vrot.slane %v2043, %v2056
        %v2059 = vpack.i.b16 %v2050, %v2050
        %v2061 = vlaneseq
        %v2062 = vshrl.u32 %v2061, 7
        %v2063 = vsub.s32 0, %v2062
        %v2064 = vrot.slane %v2059, %v2063
        %v2066 = vpack.i.b16 %v2057, %v2057
        %v2068 = vlaneseq
        %v2069 = vshrl.u32 %v2068, 7
        %v2070 = vsub.s32 0, %v2069
        %v2071 = vrot.slane %v2066, %v2070
        %v2072 = vadd.bf16 %v2002, %v2064
        %v2073 = vadd.bf16 %v2003, %v2071
        %v2074 = vadd.bf16 %v2004, %v2064
        %v2075 = vadd.bf16 %v2005, %v2071
        %v2076 = vadd.bf16 %v2006, %v2064
        %v2077 = vadd.bf16 %v2007, %v2071
        %v2078 = vadd.bf16 %v2008, %v2064
        %v2079 = vadd.bf16 %v2009, %v2071
        %v2080 = vadd.bf16 %v2010, %v2064
        %v2081 = vadd.bf16 %v2011, %v2071
        %v2082 = vadd.bf16 %v2012, %v2064
        %v2083 = vadd.bf16 %v2013, %v2071
        %v2084 = vadd.bf16 %v2014, %v2064
        %v2085 = vadd.bf16 %v2015, %v2071
        %v2086 = vadd.bf16 %v2016, %v2064
        %v2087 = vadd.bf16 %v2017, %v2071
        %v2088 = vadd.bf16 %v2018, %v2064
        %v2089 = vadd.bf16 %v2019, %v2071
        %v2090 = vadd.bf16 %v2020, %v2064
        %v2091 = vadd.bf16 %v2021, %v2071
        %v2092 = vadd.bf16 %v2022, %v2064
        %v2093 = vadd.bf16 %v2023, %v2071
        %v2094 = vadd.bf16 %v2024, %v2064
        %v2095 = vadd.bf16 %v2025, %v2071
        %v2096 = vadd.bf16 %v2026, %v2064
        %v2097 = vadd.bf16 %v2027, %v2071
        %v2098 = vadd.bf16 %v2028, %v2064
        %v2099 = vadd.bf16 %v2029, %v2071
        %v2100 = vadd.bf16 %v2030, %v2064
        %v2101 = vadd.bf16 %v2031, %v2071
        %v2102 = vadd.bf16 %v2032, %v2064
        %v2103 = vadd.bf16 %v2033, %v2071
        %v2104 = vmax.bf16 %v2072, 0
        %v2105 = vmax.bf16 %v2073, 0
        %v2106 = vmax.bf16 %v2074, 0
        %v2107 = vmax.bf16 %v2075, 0
        %v2108 = vmax.bf16 %v2076, 0
        %v2109 = vmax.bf16 %v2077, 0
        %v2110 = vmax.bf16 %v2078, 0
        %v2111 = vmax.bf16 %v2079, 0
        %v2112 = vmax.bf16 %v2080, 0
        %v2113 = vmax.bf16 %v2081, 0
        %v2114 = vmax.bf16 %v2082, 0
        %v2115 = vmax.bf16 %v2083, 0
        %v2116 = vmax.bf16 %v2084, 0
        %v2117 = vmax.bf16 %v2085, 0
        %v2118 = vmax.bf16 %v2086, 0
        %v2119 = vmax.bf16 %v2087, 0
        %v2120 = vmax.bf16 %v2088, 0
        %v2121 = vmax.bf16 %v2089, 0
        %v2122 = vmax.bf16 %v2090, 0
        %v2123 = vmax.bf16 %v2091, 0
        %v2124 = vmax.bf16 %v2092, 0
        %v2125 = vmax.bf16 %v2093, 0
        %v2126 = vmax.bf16 %v2094, 0
        %v2127 = vmax.bf16 %v2095, 0
        %v2128 = vmax.bf16 %v2096, 0
        %v2129 = vmax.bf16 %v2097, 0
        %v2130 = vmax.bf16 %v2098, 0
        %v2131 = vmax.bf16 %v2099, 0
        %v2132 = vmax.bf16 %v2100, 0
        %v2133 = vmax.bf16 %v2101, 0
        %v2134 = vmax.bf16 %v2102, 0
        %v2135 = vmax.bf16 %v2103, 0
        %v2136 = vld [vmem:[%s5] sm:$0xff]
        %v2137 = vld [vmem:[%s5 + $0x8] sm:$0xff]
        %v2138 = vld [vmem:[%s5 + $0x10] sm:$0xff]
        %v2139 = vld [vmem:[%s5 + $0x18] sm:$0xff]
        %v2140 = vld [vmem:[%s5 + $0x20] sm:$0xff]
        %v2141 = vld [vmem:[%s5 + $0x28] sm:$0xff]
        %v2142 = vld [vmem:[%s5 + $0x30] sm:$0xff]
        %v2143 = vld [vmem:[%s5 + $0x38] sm:$0xff]
        %v2144 = vld [vmem:[%s5 + $0x40] sm:$0xff]
        %v2145 = vld [vmem:[%s5 + $0x48] sm:$0xff]
        %v2146 = vld [vmem:[%s5 + $0x50] sm:$0xff]
        %v2147 = vld [vmem:[%s5 + $0x58] sm:$0xff]
        %v2148 = vld [vmem:[%s5 + $0x60] sm:$0xff]
        %v2149 = vld [vmem:[%s5 + $0x68] sm:$0xff]
        %v2150 = vld [vmem:[%s5 + $0x70] sm:$0xff]
        %v2151 = vld [vmem:[%s5 + $0x78] sm:$0xff]
        %v2152 = vld [vmem:[%s5 + $0x80] sm:$0xff]
        %v2153 = vld [vmem:[%s5 + $0x88] sm:$0xff]
        %v2154 = vld [vmem:[%s5 + $0x90] sm:$0xff]
        %v2155 = vld [vmem:[%s5 + $0x98] sm:$0xff]
        %v2156 = vld [vmem:[%s5 + $0xa0] sm:$0xff]
        %v2157 = vld [vmem:[%s5 + $0xa8] sm:$0xff]
        %v2158 = vld [vmem:[%s5 + $0xb0] sm:$0xff]
        %v2159 = vld [vmem:[%s5 + $0xb8] sm:$0xff]
        %v2160 = vld [vmem:[%s5 + $0xc0] sm:$0xff]
        %v2161 = vld [vmem:[%s5 + $0xc8] sm:$0xff]
        %v2162 = vld [vmem:[%s5 + $0xd0] sm:$0xff]
        %v2163 = vld [vmem:[%s5 + $0xd8] sm:$0xff]
        %v2164 = vld [vmem:[%s5 + $0xe0] sm:$0xff]
        %v2165 = vld [vmem:[%s5 + $0xe8] sm:$0xff]
        %v2166 = vld [vmem:[%s5 + $0xf0] sm:$0xff]
        %v2167 = vld [vmem:[%s5 + $0xf8] sm:$0xff]
        %v2200 = vunpack.c.l.b16 %v2136
        %v2201 = vunpack.c.h.b16 %v2136
        %v2202 = vunpack.c.l.b16 %v2137
        %v2203 = vunpack.c.h.b16 %v2137
        %v2204 = vunpack.c.l.b16 %v2138
        %v2205 = vunpack.c.h.b16 %v2138
        %v2206 = vunpack.c.l.b16 %v2139
        %v2207 = vunpack.c.h.b16 %v2139
        %v2208 = vunpack.c.l.b16 %v2140
        %v2209 = vunpack.c.h.b16 %v2140
        %v2210 = vunpack.c.l.b16 %v2141
        %v2211 = vunpack.c.h.b16 %v2141
        %v2212 = vunpack.c.l.b16 %v2142
        %v2213 = vunpack.c.h.b16 %v2142
        %v2214 = vunpack.c.l.b16 %v2143
        %v2215 = vunpack.c.h.b16 %v2143
        %v2216 = vunpack.c.l.b16 %v2144
        %v2217 = vunpack.c.h.b16 %v2144
        %v2218 = vunpack.c.l.b16 %v2145
        %v2219 = vunpack.c.h.b16 %v2145
        %v2220 = vunpack.c.l.b16 %v2146
        %v2221 = vunpack.c.h.b16 %v2146
        %v2222 = vunpack.c.l.b16 %v2147
        %v2223 = vunpack.c.h.b16 %v2147
        %v2224 = vunpack.c.l.b16 %v2148
        %v2225 = vunpack.c.h.b16 %v2148
        %v2226 = vunpack.c.l.b16 %v2149
        %v2227 = vunpack.c.h.b16 %v2149
        %v2228 = vunpack.c.l.b16 %v2150
        %v2229 = vunpack.c.h.b16 %v2150
        %v2230 = vunpack.c.l.b16 %v2151
        %v2231 = vunpack.c.h.b16 %v2151
        %v2232 = vunpack.c.l.b16 %v2152
        %v2233 = vunpack.c.h.b16 %v2152
        %v2234 = vunpack.c.l.b16 %v2153
        %v2235 = vunpack.c.h.b16 %v2153
        %v2236 = vunpack.c.l.b16 %v2154
        %v2237 = vunpack.c.h.b16 %v2154
        %v2238 = vunpack.c.l.b16 %v2155
        %v2239 = vunpack.c.h.b16 %v2155
        %v2240 = vunpack.c.l.b16 %v2156
        %v2241 = vunpack.c.h.b16 %v2156
        %v2242 = vunpack.c.l.b16 %v2157
        %v2243 = vunpack.c.h.b16 %v2157
        %v2244 = vunpack.c.l.b16 %v2158
        %v2245 = vunpack.c.h.b16 %v2158
        %v2246 = vunpack.c.l.b16 %v2159
        %v2247 = vunpack.c.h.b16 %v2159
        %v2248 = vunpack.c.l.b16 %v2160
        %v2249 = vunpack.c.h.b16 %v2160
        %v2250 = vunpack.c.l.b16 %v2161
        %v2251 = vunpack.c.h.b16 %v2161
        %v2252 = vunpack.c.l.b16 %v2162
        %v2253 = vunpack.c.h.b16 %v2162
        %v2254 = vunpack.c.l.b16 %v2163
        %v2255 = vunpack.c.h.b16 %v2163
        %v2256 = vunpack.c.l.b16 %v2164
        %v2257 = vunpack.c.h.b16 %v2164
        %v2258 = vunpack.c.l.b16 %v2165
        %v2259 = vunpack.c.h.b16 %v2165
        %v2260 = vunpack.c.l.b16 %v2166
        %v2261 = vunpack.c.h.b16 %v2166
        %v2262 = vunpack.c.l.b16 %v2167
        %v2263 = vunpack.c.h.b16 %v2167
        %v2264 = vpack.c.b16 %v2202, %v2200
        %v2265 = vpack.c.b16 %v2203, %v2201
        %v2266 = vpack.c.b16 %v2206, %v2204
        %v2267 = vpack.c.b16 %v2207, %v2205
        %v2268 = vpack.c.b16 %v2210, %v2208
        %v2269 = vpack.c.b16 %v2211, %v2209
        %v2270 = vpack.c.b16 %v2214, %v2212
        %v2271 = vpack.c.b16 %v2215, %v2213
        %v2272 = vpack.c.b16 %v2218, %v2216
        %v2273 = vpack.c.b16 %v2219, %v2217
        %v2274 = vpack.c.b16 %v2222, %v2220
        %v2275 = vpack.c.b16 %v2223, %v2221
        %v2276 = vpack.c.b16 %v2226, %v2224
        %v2277 = vpack.c.b16 %v2227, %v2225
        %v2278 = vpack.c.b16 %v2230, %v2228
        %v2279 = vpack.c.b16 %v2231, %v2229
        %v2280 = vpack.c.b16 %v2234, %v2232
        %v2281 = vpack.c.b16 %v2235, %v2233
        %v2282 = vpack.c.b16 %v2238, %v2236
        %v2283 = vpack.c.b16 %v2239, %v2237
        %v2284 = vpack.c.b16 %v2242, %v2240
        %v2285 = vpack.c.b16 %v2243, %v2241
        %v2286 = vpack.c.b16 %v2246, %v2244
        %v2287 = vpack.c.b16 %v2247, %v2245
        %v2288 = vpack.c.b16 %v2250, %v2248
        %v2289 = vpack.c.b16 %v2251, %v2249
        %v2290 = vpack.c.b16 %v2254, %v2252
        %v2291 = vpack.c.b16 %v2255, %v2253
        %v2292 = vpack.c.b16 %v2258, %v2256
        %v2293 = vpack.c.b16 %v2259, %v2257
        %v2294 = vpack.c.b16 %v2262, %v2260
        %v2295 = vpack.c.b16 %v2263, %v2261
        %2328 = vmatprep.subr.bf16.mxu0 %v2265
        %2329 = vmatpush1.bf16.msra.mxu0 %v2264
        %2330 = vmatprep.subr.bf16.mxu0 %v2267
        %2331 = vmatpush1.bf16.msra.mxu0 %v2266
        %2332 = vmatprep.subr.bf16.mxu0 %v2269
        %2333 = vmatpush1.bf16.msra.mxu0 %v2268
        %2334 = vmatprep.subr.bf16.mxu0 %v2271
        %2335 = vmatpush1.bf16.msra.mxu0 %v2270
        %2336 = vmatprep.subr.bf16.mxu0 %v2273
        %2337 = vmatpush1.bf16.msra.mxu0 %v2272
        %2338 = vmatprep.subr.bf16.mxu0 %v2275
        %2339 = vmatpush1.bf16.msra.mxu0 %v2274
        %2340 = vmatprep.subr.bf16.mxu0 %v2277
        %2341 = vmatpush1.bf16.msra.mxu0 %v2276
        %2342 = vmatprep.subr.bf16.mxu0 %v2279
        %2343 = vmatpush1.bf16.msra.mxu0 %v2278
        %2344 = vmatprep.subr.bf16.mxu0 %v2281
        %2345 = vmatpush1.bf16.msra.mxu0 %v2280
        %2346 = vmatprep.subr.bf16.mxu0 %v2283
        %2347 = vmatpush1.bf16.msra.mxu0 %v2282
        %2348 = vmatprep.subr.bf16.mxu0 %v2285
        %2349 = vmatpush1.bf16.msra.mxu0 %v2284
        %2350 = vmatprep.subr.bf16.mxu0 %v2287
        %2351 = vmatpush1.bf16.msra.mxu0 %v2286
        %2352 = vmatprep.subr.bf16.mxu0 %v2289
        %2353 = vmatpush1.bf16.msra.mxu0 %v2288
        %2354 = vmatprep.subr.bf16.mxu0 %v2291
        %2355 = vmatpush1.bf16.msra.mxu0 %v2290
        %2356 = vmatprep.subr.bf16.mxu0 %v2293
        %2357 = vmatpush1.bf16.msra.mxu0 %v2292
        %2358 = vmatprep.subr.bf16.mxu0 %v2295
        %2359 = vmatpush1.bf16.msra.mxu0 %v2294
        %2360 = vmatprep.mubr.bf16.mxu0 %v2105
        %2361 = vmatmul.mubr.bf16.gmra.mrb[0].mxu0 %v2104
        %v2362 = vpop.f32.mrb[0].mxu0
        %v2363 = vadd.f32 0.0, %v2362
        %v2364 = vpop.f32.mrb[0].mxu0
        %v2365 = vadd.f32 0.0, %v2364
        %v2366 = vpop.f32.mrb[0].mxu0
        %v2367 = vadd.f32 0.0, %v2366
        %v2368 = vpop.f32.mrb[0].mxu0
        %v2369 = vadd.f32 0.0, %v2368
        %2370 = vmatprep.mubr.bf16.mxu0 %v2107
        %2371 = vmatmul.mubr.bf16.gmra.mrb[0].mxu0 %v2106
        %v2372 = vpop.f32.mrb[0].mxu0
        %v2373 = vadd.f32 0.0, %v2372
        %v2374 = vpop.f32.mrb[0].mxu0
        %v2375 = vadd.f32 0.0, %v2374
        %v2376 = vpop.f32.mrb[0].mxu0
        %v2377 = vadd.f32 0.0, %v2376
        %v2378 = vpop.f32.mrb[0].mxu0
        %v2379 = vadd.f32 0.0, %v2378
        %2380 = vmatprep.mubr.bf16.mxu0 %v2109
        %2381 = vmatmul.mubr.bf16.gmra.mrb[0].mxu0 %v2108
        %v2382 = vpop.f32.mrb[0].mxu0
        %v2383 = vadd.f32 0.0, %v2382
        %v2384 = vpop.f32.mrb[0].mxu0
        %v2385 = vadd.f32 0.0, %v2384
        %v2386 = vpop.f32.mrb[0].mxu0
        %v2387 = vadd.f32 0.0, %v2386
        %v2388 = vpop.f32.mrb[0].mxu0
        %v2389 = vadd.f32 0.0, %v2388
        %2390 = vmatprep.mubr.bf16.mxu0 %v2111
        %2391 = vmatmul.mubr.bf16.gmra.mrb[0].mxu0 %v2110
        %v2392 = vpop.f32.mrb[0].mxu0
        %v2393 = vadd.f32 0.0, %v2392
        %v2394 = vpop.f32.mrb[0].mxu0
        %v2395 = vadd.f32 0.0, %v2394
        %v2396 = vpop.f32.mrb[0].mxu0
        %v2397 = vadd.f32 0.0, %v2396
        %v2398 = vpop.f32.mrb[0].mxu0
        %v2399 = vadd.f32 0.0, %v2398
        %2400 = vmatprep.mubr.bf16.mxu0 %v2113
        %2401 = vmatmul.mubr.bf16.gmra.mrb[0].mxu0 %v2112
        %v2402 = vpop.f32.mrb[0].mxu0
        %v2403 = vadd.f32 0.0, %v2402
        %v2404 = vpop.f32.mrb[0].mxu0
        %v2405 = vadd.f32 0.0, %v2404
        %v2406 = vpop.f32.mrb[0].mxu0
        %v2407 = vadd.f32 0.0, %v2406
        %v2408 = vpop.f32.mrb[0].mxu0
        %v2409 = vadd.f32 0.0, %v2408
        %2410 = vmatprep.mubr.bf16.mxu0 %v2115
        %2411 = vmatmul.mubr.bf16.gmra.mrb[0].mxu0 %v2114
        %v2412 = vpop.f32.mrb[0].mxu0
        %v2413 = vadd.f32 0.0, %v2412
        %v2414 = vpop.f32.mrb[0].mxu0
        %v2415 = vadd.f32 0.0, %v2414
        %v2416 = vpop.f32.mrb[0].mxu0
        %v2417 = vadd.f32 0.0, %v2416
        %v2418 = vpop.f32.mrb[0].mxu0
        %v2419 = vadd.f32 0.0, %v2418
        %2420 = vmatprep.mubr.bf16.mxu0 %v2117
        %2421 = vmatmul.mubr.bf16.gmra.mrb[0].mxu0 %v2116
        %v2422 = vpop.f32.mrb[0].mxu0
        %v2423 = vadd.f32 0.0, %v2422
        %v2424 = vpop.f32.mrb[0].mxu0
        %v2425 = vadd.f32 0.0, %v2424
        %v2426 = vpop.f32.mrb[0].mxu0
        %v2427 = vadd.f32 0.0, %v2426
        %v2428 = vpop.f32.mrb[0].mxu0
        %v2429 = vadd.f32 0.0, %v2428
        %2430 = vmatprep.mubr.bf16.mxu0 %v2119
        %2431 = vmatmul.mubr.bf16.gmra.mrb[0].mxu0 %v2118
        %v2432 = vpop.f32.mrb[0].mxu0
        %v2433 = vadd.f32 0.0, %v2432
        %v2434 = vpop.f32.mrb[0].mxu0
        %v2435 = vadd.f32 0.0, %v2434
        %v2436 = vpop.f32.mrb[0].mxu0
        %v2437 = vadd.f32 0.0, %v2436
        %v2438 = vpop.f32.mrb[0].mxu0
        %v2439 = vadd.f32 0.0, %v2438
        %2440 = vmatprep.mubr.bf16.mxu0 %v2121
        %2441 = vmatmul.mubr.bf16.gmra.mrb[0].mxu0 %v2120
        %v2442 = vpop.f32.mrb[0].mxu0
        %v2443 = vadd.f32 0.0, %v2442
        %v2444 = vpop.f32.mrb[0].mxu0
        %v2445 = vadd.f32 0.0, %v2444
        %v2446 = vpop.f32.mrb[0].mxu0
        %v2447 = vadd.f32 0.0, %v2446
        %v2448 = vpop.f32.mrb[0].mxu0
        %v2449 = vadd.f32 0.0, %v2448
        %2450 = vmatprep.mubr.bf16.mxu0 %v2123
        %2451 = vmatmul.mubr.bf16.gmra.mrb[0].mxu0 %v2122
        %v2452 = vpop.f32.mrb[0].mxu0
        %v2453 = vadd.f32 0.0, %v2452
        %v2454 = vpop.f32.mrb[0].mxu0
        %v2455 = vadd.f32 0.0, %v2454
        %v2456 = vpop.f32.mrb[0].mxu0
        %v2457 = vadd.f32 0.0, %v2456
        %v2458 = vpop.f32.mrb[0].mxu0
        %v2459 = vadd.f32 0.0, %v2458
        %2460 = vmatprep.mubr.bf16.mxu0 %v2125
        %2461 = vmatmul.mubr.bf16.gmra.mrb[0].mxu0 %v2124
        %v2462 = vpop.f32.mrb[0].mxu0
        %v2463 = vadd.f32 0.0, %v2462
        %v2464 = vpop.f32.mrb[0].mxu0
        %v2465 = vadd.f32 0.0, %v2464
        %v2466 = vpop.f32.mrb[0].mxu0
        %v2467 = vadd.f32 0.0, %v2466
        %v2468 = vpop.f32.mrb[0].mxu0
        %v2469 = vadd.f32 0.0, %v2468
        %2470 = vmatprep.mubr.bf16.mxu0 %v2127
        %2471 = vmatmul.mubr.bf16.gmra.mrb[0].mxu0 %v2126
        %v2472 = vpop.f32.mrb[0].mxu0
        %v2473 = vadd.f32 0.0, %v2472
        %v2474 = vpop.f32.mrb[0].mxu0
        %v2475 = vadd.f32 0.0, %v2474
        %v2476 = vpop.f32.mrb[0].mxu0
        %v2477 = vadd.f32 0.0, %v2476
        %v2478 = vpop.f32.mrb[0].mxu0
        %v2479 = vadd.f32 0.0, %v2478
        %2480 = vmatprep.mubr.bf16.mxu0 %v2129
        %2481 = vmatmul.mubr.bf16.gmra.mrb[0].mxu0 %v2128
        %v2482 = vpop.f32.mrb[0].mxu0
        %v2483 = vadd.f32 0.0, %v2482
        %v2484 = vpop.f32.mrb[0].mxu0
        %v2485 = vadd.f32 0.0, %v2484
        %v2486 = vpop.f32.mrb[0].mxu0
        %v2487 = vadd.f32 0.0, %v2486
        %v2488 = vpop.f32.mrb[0].mxu0
        %v2489 = vadd.f32 0.0, %v2488
        %2490 = vmatprep.mubr.bf16.mxu0 %v2131
        %2491 = vmatmul.mubr.bf16.gmra.mrb[0].mxu0 %v2130
        %v2492 = vpop.f32.mrb[0].mxu0
        %v2493 = vadd.f32 0.0, %v2492
        %v2494 = vpop.f32.mrb[0].mxu0
        %v2495 = vadd.f32 0.0, %v2494
        %v2496 = vpop.f32.mrb[0].mxu0
        %v2497 = vadd.f32 0.0, %v2496
        %v2498 = vpop.f32.mrb[0].mxu0
        %v2499 = vadd.f32 0.0, %v2498
        %2500 = vmatprep.mubr.bf16.mxu0 %v2133
        %2501 = vmatmul.mubr.bf16.gmra.mrb[0].mxu0 %v2132
        %v2502 = vpop.f32.mrb[0].mxu0
        %v2503 = vadd.f32 0.0, %v2502
        %v2504 = vpop.f32.mrb[0].mxu0
        %v2505 = vadd.f32 0.0, %v2504
        %v2506 = vpop.f32.mrb[0].mxu0
        %v2507 = vadd.f32 0.0, %v2506
        %v2508 = vpop.f32.mrb[0].mxu0
        %v2509 = vadd.f32 0.0, %v2508
        %2510 = vmatprep.mubr.bf16.mxu0 %v2135
        %2511 = vmatmul.mubr.bf16.gmra.mrb[0].mxu0 %v2134
        %v2512 = vpop.f32.mrb[0].mxu0
        %v2513 = vadd.f32 0.0, %v2512
        %v2514 = vpop.f32.mrb[0].mxu0
        %v2515 = vadd.f32 0.0, %v2514
        %v2516 = vpop.f32.mrb[0].mxu0
        %v2517 = vadd.f32 0.0, %v2516
        %v2518 = vpop.f32.mrb[0].mxu0
        %v2519 = vadd.f32 0.0, %v2518
        %2520 = vdwg.mxu0
        %v2521 = vpack.c.bf16 %v2367, %v2363
        %v2522 = vpack.c.bf16 %v2369, %v2365
        %v2523 = vpack.c.bf16 %v2377, %v2373
        %v2524 = vpack.c.bf16 %v2379, %v2375
        %v2525 = vpack.c.bf16 %v2387, %v2383
        %v2526 = vpack.c.bf16 %v2389, %v2385
        %v2527 = vpack.c.bf16 %v2397, %v2393
        %v2528 = vpack.c.bf16 %v2399, %v2395
        %v2529 = vpack.c.bf16 %v2407, %v2403
        %v2530 = vpack.c.bf16 %v2409, %v2405
        %v2531 = vpack.c.bf16 %v2417, %v2413
        %v2532 = vpack.c.bf16 %v2419, %v2415
        %v2533 = vpack.c.bf16 %v2427, %v2423
        %v2534 = vpack.c.bf16 %v2429, %v2425
        %v2535 = vpack.c.bf16 %v2437, %v2433
        %v2536 = vpack.c.bf16 %v2439, %v2435
        %v2537 = vpack.c.bf16 %v2447, %v2443
        %v2538 = vpack.c.bf16 %v2449, %v2445
        %v2539 = vpack.c.bf16 %v2457, %v2453
        %v2540 = vpack.c.bf16 %v2459, %v2455
        %v2541 = vpack.c.bf16 %v2467, %v2463
        %v2542 = vpack.c.bf16 %v2469, %v2465
        %v2543 = vpack.c.bf16 %v2477, %v2473
        %v2544 = vpack.c.bf16 %v2479, %v2475
        %v2545 = vpack.c.bf16 %v2487, %v2483
        %v2546 = vpack.c.bf16 %v2489, %v2485
        %v2547 = vpack.c.bf16 %v2497, %v2493
        %v2548 = vpack.c.bf16 %v2499, %v2495
        %v2549 = vpack.c.bf16 %v2507, %v2503
        %v2550 = vpack.c.bf16 %v2509, %v2505
        %v2551 = vpack.c.bf16 %v2517, %v2513
        %v2552 = vpack.c.bf16 %v2519, %v2515
        %v2553 = vld [vmem:[%s6] sm:$0x3]
        %v2556 = vunpack.c.l.s4 1966171168
        %v2557 = vunpack.c.0.s8 %v2556
        %v2558 = vlaneseq
        %v2559 = vshrl.u32 %v2558, 7
        %v2560 = vsub.s32 %v2557, %v2559
        %v2561 = vrot.slane %v2553, %v2560
        %v2562 = vcombine.high %v2561, %v2561
        %v2564 = vunpack.c.l.s4 1966171168
        %v2565 = vunpack.c.0.s8 %v2564
        %v2566 = vlaneseq
        %v2567 = vshrl.u32 %v2566, 7
        %v2568 = vsub.s32 %v2565, %v2567
        %v2569 = vrot.slane %v2561, %v2568
        %v2571 = vunpack.c.l.s4 1966171168
        %v2572 = vunpack.c.0.s8 %v2571
        %v2573 = vlaneseq
        %v2574 = vshrl.u32 %v2573, 7
        %v2575 = vsub.s32 %v2572, %v2574
        %v2576 = vrot.slane %v2562, %v2575
        %v2578 = vpack.i.b16 %v2569, %v2569
        %v2580 = vlaneseq
        %v2581 = vshrl.u32 %v2580, 7
        %v2582 = vsub.s32 0, %v2581
        %v2583 = vrot.slane %v2578, %v2582
        %v2585 = vpack.i.b16 %v2576, %v2576
        %v2587 = vlaneseq
        %v2588 = vshrl.u32 %v2587, 7
        %v2589 = vsub.s32 0, %v2588
        %v2590 = vrot.slane %v2585, %v2589
        %v2591 = vadd.bf16 %v2521, %v2583
        %v2592 = vadd.bf16 %v2522, %v2590
        %v2593 = vadd.bf16 %v2523, %v2583
        %v2594 = vadd.bf16 %v2524, %v2590
        %v2595 = vadd.bf16 %v2525, %v2583
        %v2596 = vadd.bf16 %v2526, %v2590
        %v2597 = vadd.bf16 %v2527, %v2583
        %v2598 = vadd.bf16 %v2528, %v2590
        %v2599 = vadd.bf16 %v2529, %v2583
        %v2600 = vadd.bf16 %v2530, %v2590
        %v2601 = vadd.bf16 %v2531, %v2583
        %v2602 = vadd.bf16 %v2532, %v2590
        %v2603 = vadd.bf16 %v2533, %v2583
        %v2604 = vadd.bf16 %v2534, %v2590
        %v2605 = vadd.bf16 %v2535, %v2583
        %v2606 = vadd.bf16 %v2536, %v2590
        %v2607 = vadd.bf16 %v2537, %v2583
        %v2608 = vadd.bf16 %v2538, %v2590
        %v2609 = vadd.bf16 %v2539, %v2583
        %v2610 = vadd.bf16 %v2540, %v2590
        %v2611 = vadd.bf16 %v2541, %v2583
        %v2612 = vadd.bf16 %v2542, %v2590
        %v2613 = vadd.bf16 %v2543, %v2583
        %v2614 = vadd.bf16 %v2544, %v2590
        %v2615 = vadd.bf16 %v2545, %v2583
        %v2616 = vadd.bf16 %v2546, %v2590
        %v2617 = vadd.bf16 %v2547, %v2583
        %v2618 = vadd.bf16 %v2548, %v2590
        %v2619 = vadd.bf16 %v2549, %v2583
        %v2620 = vadd.bf16 %v2550, %v2590
        %v2621 = vadd.bf16 %v2551, %v2583
        %v2622 = vadd.bf16 %v2552, %v2590
        %v2623 = vmax.bf16 %v2591, 0
        %v2624 = vmax.bf16 %v2592, 0
        %v2625 = vmax.bf16 %v2593, 0
        %v2626 = vmax.bf16 %v2594, 0
        %v2627 = vmax.bf16 %v2595, 0
        %v2628 = vmax.bf16 %v2596, 0
        %v2629 = vmax.bf16 %v2597, 0
        %v2630 = vmax.bf16 %v2598, 0
        %v2631 = vmax.bf16 %v2599, 0
        %v2632 = vmax.bf16 %v2600, 0
        %v2633 = vmax.bf16 %v2601, 0
        %v2634 = vmax.bf16 %v2602, 0
        %v2635 = vmax.bf16 %v2603, 0
        %v2636 = vmax.bf16 %v2604, 0
        %v2637 = vmax.bf16 %v2605, 0
        %v2638 = vmax.bf16 %v2606, 0
        %v2639 = vmax.bf16 %v2607, 0
        %v2640 = vmax.bf16 %v2608, 0
        %v2641 = vmax.bf16 %v2609, 0
        %v2642 = vmax.bf16 %v2610, 0
        %v2643 = vmax.bf16 %v2611, 0
        %v2644 = vmax.bf16 %v2612, 0
        %v2645 = vmax.bf16 %v2613, 0
        %v2646 = vmax.bf16 %v2614, 0
        %v2647 = vmax.bf16 %v2615, 0
        %v2648 = vmax.bf16 %v2616, 0
        %v2649 = vmax.bf16 %v2617, 0
        %v2650 = vmax.bf16 %v2618, 0
        %v2651 = vmax.bf16 %v2619, 0
        %v2652 = vmax.bf16 %v2620, 0
        %v2653 = vmax.bf16 %v2621, 0
        %v2654 = vmax.bf16 %v2622, 0
        %v2655 = vld [vmem:[%s7] sm:$0xf]
        %v2656 = vld [vmem:[%s7 + $0x4] sm:$0xf]
        %v2657 = vld [vmem:[%s7 + $0x8] sm:$0xf]
        %v2658 = vld [vmem:[%s7 + $0xc] sm:$0xf]
        %v2659 = vld [vmem:[%s7 + $0x10] sm:$0xf]
        %v2660 = vld [vmem:[%s7 + $0x14] sm:$0xf]
        %v2661 = vld [vmem:[%s7 + $0x18] sm:$0xf]
        %v2662 = vld [vmem:[%s7 + $0x1c] sm:$0xf]
        %v2663 = vld [vmem:[%s7 + $0x20] sm:$0xf]
        %v2664 = vld [vmem:[%s7 + $0x24] sm:$0xf]
        %v2665 = vld [vmem:[%s7 + $0x28] sm:$0xf]
        %v2666 = vld [vmem:[%s7 + $0x2c] sm:$0xf]
        %v2667 = vld [vmem:[%s7 + $0x30] sm:$0xf]
        %v2668 = vld [vmem:[%s7 + $0x34] sm:$0xf]
        %v2669 = vld [vmem:[%s7 + $0x38] sm:$0xf]
        %v2670 = vld [vmem:[%s7 + $0x3c] sm:$0xf]
        %v2671 = vld [vmem:[%s7 + $0x40] sm:$0xf]
        %v2672 = vld [vmem:[%s7 + $0x44] sm:$0xf]
        %v2673 = vld [vmem:[%s7 + $0x48] sm:$0xf]
        %v2674 = vld [vmem:[%s7 + $0x4c] sm:$0xf]
        %v2675 = vld [vmem:[%s7 + $0x50] sm:$0xf]
        %v2676 = vld [vmem:[%s7 + $0x54] sm:$0xf]
        %v2677 = vld [vmem:[%s7 + $0x58] sm:$0xf]
        %v2678 = vld [vmem:[%s7 + $0x5c] sm:$0xf]
        %v2679 = vld [vmem:[%s7 + $0x60] sm:$0xf]
        %v2680 = vld [vmem:[%s7 + $0x64] sm:$0xf]
        %v2681 = vld [vmem:[%s7 + $0x68] sm:$0xf]
        %v2682 = vld [vmem:[%s7 + $0x6c] sm:$0xf]
        %v2683 = vld [vmem:[%s7 + $0x70] sm:$0xf]
        %v2684 = vld [vmem:[%s7 + $0x74] sm:$0xf]
        %v2685 = vld [vmem:[%s7 + $0x78] sm:$0xf]
        %v2686 = vld [vmem:[%s7 + $0x7c] sm:$0xf]
        %v2719 = vunpack.c.l.b16 %v2655
        %v2720 = vunpack.c.l.b16 %v2656
        %v2721 = vunpack.c.l.b16 %v2657
        %v2722 = vunpack.c.l.b16 %v2658
        %v2723 = vunpack.c.l.b16 %v2659
        %v2724 = vunpack.c.l.b16 %v2660
        %v2725 = vunpack.c.l.b16 %v2661
        %v2726 = vunpack.c.l.b16 %v2662
        %v2727 = vunpack.c.l.b16 %v2663
        %v2728 = vunpack.c.l.b16 %v2664
        %v2729 = vunpack.c.l.b16 %v2665
        %v2730 = vunpack.c.l.b16 %v2666
        %v2731 = vunpack.c.l.b16 %v2667
        %v2732 = vunpack.c.l.b16 %v2668
        %v2733 = vunpack.c.l.b16 %v2669
        %v2734 = vunpack.c.l.b16 %v2670
        %v2735 = vunpack.c.l.b16 %v2671
        %v2736 = vunpack.c.l.b16 %v2672
        %v2737 = vunpack.c.l.b16 %v2673
        %v2738 = vunpack.c.l.b16 %v2674
        %v2739 = vunpack.c.l.b16 %v2675
        %v2740 = vunpack.c.l.b16 %v2676
        %v2741 = vunpack.c.l.b16 %v2677
        %v2742 = vunpack.c.l.b16 %v2678
        %v2743 = vunpack.c.l.b16 %v2679
        %v2744 = vunpack.c.l.b16 %v2680
        %v2745 = vunpack.c.l.b16 %v2681
        %v2746 = vunpack.c.l.b16 %v2682
        %v2747 = vunpack.c.l.b16 %v2683
        %v2748 = vunpack.c.l.b16 %v2684
        %v2749 = vunpack.c.l.b16 %v2685
        %v2750 = vunpack.c.l.b16 %v2686
        %v2751 = vpack.c.b16 %v2720, %v2719
        %v2752 = vpack.c.b16 %v2722, %v2721
        %v2753 = vpack.c.b16 %v2724, %v2723
        %v2754 = vpack.c.b16 %v2726, %v2725
        %v2755 = vpack.c.b16 %v2728, %v2727
        %v2756 = vpack.c.b16 %v2730, %v2729
        %v2757 = vpack.c.b16 %v2732, %v2731
        %v2758 = vpack.c.b16 %v2734, %v2733
        %v2759 = vpack.c.b16 %v2736, %v2735
        %v2760 = vpack.c.b16 %v2738, %v2737
        %v2761 = vpack.c.b16 %v2740, %v2739
        %v2762 = vpack.c.b16 %v2742, %v2741
        %v2763 = vpack.c.b16 %v2744, %v2743
        %v2764 = vpack.c.b16 %v2746, %v2745
        %v2765 = vpack.c.b16 %v2748, %v2747
        %v2766 = vpack.c.b16 %v2750, %v2749
        %2783 = vmatprep.subr.bf16.mxu0 0
        %2784 = vmatpush1.bf16.msra.mxu0 %v2751
        %2785 = vmatprep.subr.bf16.mxu0 0
        %2786 = vmatpush1.bf16.msra.mxu0 %v2752
        %2787 = vmatprep.subr.bf16.mxu0 0
        %2788 = vmatpush1.bf16.msra.mxu0 %v2753
        %2789 = vmatprep.subr.bf16.mxu0 0
        %2790 = vmatpush1.bf16.msra.mxu0 %v2754
        %2791 = vmatprep.subr.bf16.mxu0 0
        %2792 = vmatpush1.bf16.msra.mxu0 %v2755
        %2793 = vmatprep.subr.bf16.mxu0 0
        %2794 = vmatpush1.bf16.msra.mxu0 %v2756
        %2795 = vmatprep.subr.bf16.mxu0 0
        %2796 = vmatpush1.bf16.msra.mxu0 %v2757
        %2797 = vmatprep.subr.bf16.mxu0 0
        %2798 = vmatpush1.bf16.msra.mxu0 %v2758
        %2799 = vmatprep.subr.bf16.mxu0 0
        %2800 = vmatpush1.bf16.msra.mxu0 %v2759
        %2801 = vmatprep.subr.bf16.mxu0 0
        %2802 = vmatpush1.bf16.msra.mxu0 %v2760
        %2803 = vmatprep.subr.bf16.mxu0 0
        %2804 = vmatpush1.bf16.msra.mxu0 %v2761
        %2805 = vmatprep.subr.bf16.mxu0 0
        %2806 = vmatpush1.bf16.msra.mxu0 %v2762
        %2807 = vmatprep.subr.bf16.mxu0 0
        %2808 = vmatpush1.bf16.msra.mxu0 %v2763
        %2809 = vmatprep.subr.bf16.mxu0 0
        %2810 = vmatpush1.bf16.msra.mxu0 %v2764
        %2811 = vmatprep.subr.bf16.mxu0 0
        %2812 = vmatpush1.bf16.msra.mxu0 %v2765
        %2813 = vmatprep.subr.bf16.mxu0 0
        %2814 = vmatpush1.bf16.msra.mxu0 %v2766
        %2815 = vmatprep.mubr.bf16.mxu0 %v2624
        %2816 = vmatmul.mubr.bf16.gmra.mrb[0].mxu0 %v2623
        %v2817 = vpop.f32.mrb[0].mxu0
        %v2818 = vadd.f32 0.0, %v2817
        %v2819 = vpop.f32.mrb[0].mxu0
        %v2820 = vpop.f32.mrb[0].mxu0
        %v2821 = vadd.f32 0.0, %v2820
        %v2822 = vpop.f32.mrb[0].mxu0
        %2823 = vmatprep.mubr.bf16.mxu0 %v2626
        %2824 = vmatmul.mubr.bf16.gmra.mrb[0].mxu0 %v2625
        %v2825 = vpop.f32.mrb[0].mxu0
        %v2826 = vadd.f32 0.0, %v2825
        %v2827 = vpop.f32.mrb[0].mxu0
        %v2828 = vpop.f32.mrb[0].mxu0
        %v2829 = vadd.f32 0.0, %v2828
        %v2830 = vpop.f32.mrb[0].mxu0
        %2831 = vmatprep.mubr.bf16.mxu0 %v2628
        %2832 = vmatmul.mubr.bf16.gmra.mrb[0].mxu0 %v2627
        %v2833 = vpop.f32.mrb[0].mxu0
        %v2834 = vadd.f32 0.0, %v2833
        %v2835 = vpop.f32.mrb[0].mxu0
        %v2836 = vpop.f32.mrb[0].mxu0
        %v2837 = vadd.f32 0.0, %v2836
        %v2838 = vpop.f32.mrb[0].mxu0
        %2839 = vmatprep.mubr.bf16.mxu0 %v2630
        %2840 = vmatmul.mubr.bf16.gmra.mrb[0].mxu0 %v2629
        %v2841 = vpop.f32.mrb[0].mxu0
        %v2842 = vadd.f32 0.0, %v2841
        %v2843 = vpop.f32.mrb[0].mxu0
        %v2844 = vpop.f32.mrb[0].mxu0
        %v2845 = vadd.f32 0.0, %v2844
        %v2846 = vpop.f32.mrb[0].mxu0
        %2847 = vmatprep.mubr.bf16.mxu0 %v2632
        %2848 = vmatmul.mubr.bf16.gmra.mrb[0].mxu0 %v2631
        %v2849 = vpop.f32.mrb[0].mxu0
        %v2850 = vadd.f32 0.0, %v2849
        %v2851 = vpop.f32.mrb[0].mxu0
        %v2852 = vpop.f32.mrb[0].mxu0
        %v2853 = vadd.f32 0.0, %v2852
        %v2854 = vpop.f32.mrb[0].mxu0
        %2855 = vmatprep.mubr.bf16.mxu0 %v2634
        %2856 = vmatmul.mubr.bf16.gmra.mrb[0].mxu0 %v2633
        %v2857 = vpop.f32.mrb[0].mxu0
        %v2858 = vadd.f32 0.0, %v2857
        %v2859 = vpop.f32.mrb[0].mxu0
        %v2860 = vpop.f32.mrb[0].mxu0
        %v2861 = vadd.f32 0.0, %v2860
        %v2862 = vpop.f32.mrb[0].mxu0
        %2863 = vmatprep.mubr.bf16.mxu0 %v2636
        %2864 = vmatmul.mubr.bf16.gmra.mrb[0].mxu0 %v2635
        %v2865 = vpop.f32.mrb[0].mxu0
        %v2866 = vadd.f32 0.0, %v2865
        %v2867 = vpop.f32.mrb[0].mxu0
        %v2868 = vpop.f32.mrb[0].mxu0
        %v2869 = vadd.f32 0.0, %v2868
        %v2870 = vpop.f32.mrb[0].mxu0
        %2871 = vmatprep.mubr.bf16.mxu0 %v2638
        %2872 = vmatmul.mubr.bf16.gmra.mrb[0].mxu0 %v2637
        %v2873 = vpop.f32.mrb[0].mxu0
        %v2874 = vadd.f32 0.0, %v2873
        %v2875 = vpop.f32.mrb[0].mxu0
        %v2876 = vpop.f32.mrb[0].mxu0
        %v2877 = vadd.f32 0.0, %v2876
        %v2878 = vpop.f32.mrb[0].mxu0
        %2879 = vmatprep.mubr.bf16.mxu0 %v2640
        %2880 = vmatmul.mubr.bf16.gmra.mrb[0].mxu0 %v2639
        %v2881 = vpop.f32.mrb[0].mxu0
        %v2882 = vadd.f32 0.0, %v2881
        %v2883 = vpop.f32.mrb[0].mxu0
        %v2884 = vpop.f32.mrb[0].mxu0
        %v2885 = vadd.f32 0.0, %v2884
        %v2886 = vpop.f32.mrb[0].mxu0
        %2887 = vmatprep.mubr.bf16.mxu0 %v2642
        %2888 = vmatmul.mubr.bf16.gmra.mrb[0].mxu0 %v2641
        %v2889 = vpop.f32.mrb[0].mxu0
        %v2890 = vadd.f32 0.0, %v2889
        %v2891 = vpop.f32.mrb[0].mxu0
        %v2892 = vpop.f32.mrb[0].mxu0
        %v2893 = vadd.f32 0.0, %v2892
        %v2894 = vpop.f32.mrb[0].mxu0
        %2895 = vmatprep.mubr.bf16.mxu0 %v2644
        %2896 = vmatmul.mubr.bf16.gmra.mrb[0].mxu0 %v2643
        %v2897 = vpop.f32.mrb[0].mxu0
        %v2898 = vadd.f32 0.0, %v2897
        %v2899 = vpop.f32.mrb[0].mxu0
        %v2900 = vpop.f32.mrb[0].mxu0
        %v2901 = vadd.f32 0.0, %v2900
        %v2902 = vpop.f32.mrb[0].mxu0
        %2903 = vmatprep.mubr.bf16.mxu0 %v2646
        %2904 = vmatmul.mubr.bf16.gmra.mrb[0].mxu0 %v2645
        %v2905 = vpop.f32.mrb[0].mxu0
        %v2906 = vadd.f32 0.0, %v2905
        %v2907 = vpop.f32.mrb[0].mxu0
        %v2908 = vpop.f32.mrb[0].mxu0
        %v2909 = vadd.f32 0.0, %v2908
        %v2910 = vpop.f32.mrb[0].mxu0
        %2911 = vmatprep.mubr.bf16.mxu0 %v2648
        %2912 = vmatmul.mubr.bf16.gmra.mrb[0].mxu0 %v2647
        %v2913 = vpop.f32.mrb[0].mxu0
        %v2914 = vadd.f32 0.0, %v2913
        %v2915 = vpop.f32.mrb[0].mxu0
        %v2916 = vpop.f32.mrb[0].mxu0
        %v2917 = vadd.f32 0.0, %v2916
        %v2918 = vpop.f32.mrb[0].mxu0
        %2919 = vmatprep.mubr.bf16.mxu0 %v2650
        %2920 = vmatmul.mubr.bf16.gmra.mrb[0].mxu0 %v2649
        %v2921 = vpop.f32.mrb[0].mxu0
        %v2922 = vadd.f32 0.0, %v2921
        %v2923 = vpop.f32.mrb[0].mxu0
        %v2924 = vpop.f32.mrb[0].mxu0
        %v2925 = vadd.f32 0.0, %v2924
        %v2926 = vpop.f32.mrb[0].mxu0
        %2927 = vmatprep.mubr.bf16.mxu0 %v2652
        %2928 = vmatmul.mubr.bf16.gmra.mrb[0].mxu0 %v2651
        %v2929 = vpop.f32.mrb[0].mxu0
        %v2930 = vadd.f32 0.0, %v2929
        %v2931 = vpop.f32.mrb[0].mxu0
        %v2932 = vpop.f32.mrb[0].mxu0
        %v2933 = vadd.f32 0.0, %v2932
        %v2934 = vpop.f32.mrb[0].mxu0
        %2935 = vmatprep.mubr.bf16.mxu0 %v2654
        %2936 = vmatmul.mubr.bf16.gmra.mrb[0].mxu0 %v2653
        %v2937 = vpop.f32.mrb[0].mxu0
        %v2938 = vadd.f32 0.0, %v2937
        %v2939 = vpop.f32.mrb[0].mxu0
        %v2940 = vpop.f32.mrb[0].mxu0
        %v2941 = vadd.f32 0.0, %v2940
        %v2942 = vpop.f32.mrb[0].mxu0
        %2943 = vdwg.mxu0
        %v2944 = vpack.c.bf16 %v2821, %v2818
        %v2945 = vpack.c.bf16 %v2829, %v2826
        %v2946 = vpack.c.bf16 %v2837, %v2834
        %v2947 = vpack.c.bf16 %v2845, %v2842
        %v2948 = vpack.c.bf16 %v2853, %v2850
        %v2949 = vpack.c.bf16 %v2861, %v2858
        %v2950 = vpack.c.bf16 %v2869, %v2866
        %v2951 = vpack.c.bf16 %v2877, %v2874
        %v2952 = vpack.c.bf16 %v2885, %v2882
        %v2953 = vpack.c.bf16 %v2893, %v2890
        %v2954 = vpack.c.bf16 %v2901, %v2898
        %v2955 = vpack.c.bf16 %v2909, %v2906
        %v2956 = vpack.c.bf16 %v2917, %v2914
        %v2957 = vpack.c.bf16 %v2925, %v2922
        %v2958 = vpack.c.bf16 %v2933, %v2930
        %v2959 = vpack.c.bf16 %v2941, %v2938
        %v2960 = vld [vmem:[%s8] sm:$0x1]
        %v2962 = vpack.i.b16 %v2960, %v2960
        %v2964 = vlaneseq
        %v2965 = vshrl.u32 %v2964, 7
        %v2966 = vsub.s32 0, %v2965
        %v2967 = vrot.slane %v2962, %v2966
        %v2968 = vadd.bf16 %v2944, %v2967
        %v2969 = vadd.bf16 %v2945, %v2967
        %v2970 = vadd.bf16 %v2946, %v2967
        %v2971 = vadd.bf16 %v2947, %v2967
        %v2972 = vadd.bf16 %v2948, %v2967
        %v2973 = vadd.bf16 %v2949, %v2967
        %v2974 = vadd.bf16 %v2950, %v2967
        %v2975 = vadd.bf16 %v2951, %v2967
        %v2976 = vadd.bf16 %v2952, %v2967
        %v2977 = vadd.bf16 %v2953, %v2967
        %v2978 = vadd.bf16 %v2954, %v2967
        %v2979 = vadd.bf16 %v2955, %v2967
        %v2980 = vadd.bf16 %v2956, %v2967
        %v2981 = vadd.bf16 %v2957, %v2967
        %v2982 = vadd.bf16 %v2958, %v2967
        %v2983 = vadd.bf16 %v2959, %v2967
        %v2984 = vmax.bf16 %v2968, 0
        %v2985 = vmax.bf16 %v2969, 0
        %v2986 = vmax.bf16 %v2970, 0
        %v2987 = vmax.bf16 %v2971, 0
        %v2988 = vmax.bf16 %v2972, 0
        %v2989 = vmax.bf16 %v2973, 0
        %v2990 = vmax.bf16 %v2974, 0
        %v2991 = vmax.bf16 %v2975, 0
        %v2992 = vmax.bf16 %v2976, 0
        %v2993 = vmax.bf16 %v2977, 0
        %v2994 = vmax.bf16 %v2978, 0
        %v2995 = vmax.bf16 %v2979, 0
        %v2996 = vmax.bf16 %v2980, 0
        %v2997 = vmax.bf16 %v2981, 0
        %v2998 = vmax.bf16 %v2982, 0
        %v2999 = vmax.bf16 %v2983, 0
        %v3000 = vld [vmem:[%s9] sm:$0x1]
        %v3001 = vld [vmem:[#allocation2] sm:$0x1]
        %3003 = vset.pattern.permute.xlu0 0
        %3004 = vperm.xlu0 %3003, %v3001
        %v3005 = vpop.permute.xlu0 %3004
        %v3007 = vlaneseq
        %v3008 = vshrl.u32 %v3007, 7
        %v3009 = vsub.s32 0, %v3008
        %v3010 = vrot.slane %v3005, %v3009
        %3011 = vmatprep.subr.bf16.mxu0 0
        %3012 = vmatpush1.bf16.xpose.msra.mxu0 %v2984
        %3013 = vmatprep.subr.bf16.mxu0 0
        %3014 = vmatpush1.bf16.xpose.msra.mxu0 %v2985
        %3015 = vmatprep.subr.bf16.mxu0 0
        %3016 = vmatpush1.bf16.xpose.msra.mxu0 %v2986
        %3017 = vmatprep.subr.bf16.mxu0 0
        %3018 = vmatpush1.bf16.xpose.msra.mxu0 %v2987
        %3019 = vmatprep.subr.bf16.mxu0 0
        %3020 = vmatpush1.bf16.xpose.msra.mxu0 %v2988
        %3021 = vmatprep.subr.bf16.mxu0 0
        %3022 = vmatpush1.bf16.xpose.msra.mxu0 %v2989
        %3023 = vmatprep.subr.bf16.mxu0 0
        %3024 = vmatpush1.bf16.xpose.msra.mxu0 %v2990
        %3025 = vmatprep.subr.bf16.mxu0 0
        %3026 = vmatpush1.bf16.xpose.msra.mxu0 %v2991
        %3027 = vmatprep.subr.bf16.mxu0 0
        %3028 = vmatpush1.bf16.xpose.msra.mxu0 %v2992
        %3029 = vmatprep.subr.bf16.mxu0 0
        %3030 = vmatpush1.bf16.xpose.msra.mxu0 %v2993
        %3031 = vmatprep.subr.bf16.mxu0 0
        %3032 = vmatpush1.bf16.xpose.msra.mxu0 %v2994
        %3033 = vmatprep.subr.bf16.mxu0 0
        %3034 = vmatpush1.bf16.xpose.msra.mxu0 %v2995
        %3035 = vmatprep.subr.bf16.mxu0 0
        %3036 = vmatpush1.bf16.xpose.msra.mxu0 %v2996
        %3037 = vmatprep.subr.bf16.mxu0 0
        %3038 = vmatpush1.bf16.xpose.msra.mxu0 %v2997
        %3039 = vmatprep.subr.bf16.mxu0 0
        %3040 = vmatpush1.bf16.xpose.msra.mxu0 %v2998
        %3041 = vmatprep.subr.bf16.mxu0 0
        %3042 = vmatpush1.bf16.xpose.msra.mxu0 %v2999
        %3043 = vmatprep.mubr.bf16.mxu0 0
        %3044 = vmatmul.mubr.bf16.gmra.mrb[0].mxu0 %v3000
        %v3045 = vpop.f32.mrb[0].mxu0
        %v3046 = vadd.f32 %v3010, %v3045
        %v3047 = vpop.f32.mrb[0].mxu0
        %v3048 = vadd.f32 %v3010, %v3047
        %v3049 = vpop.f32.mrb[0].mxu0
        %v3050 = vpop.f32.mrb[0].mxu0
        %3051 = vdwg.mxu0
        %v3054 = vcombine.low %v3046, %v3048
        %v3056 = vunpack.c.l.s4 1966171168
        %v3057 = vunpack.c.0.s8 %v3056
        %v3058 = vlaneseq
        %v3059 = vshrl.u32 %v3058, 7
        %v3060 = vsub.s32 %v3057, %v3059
        %v3061 = vrot.slane %v3054, %v3060
        %v3063 = vunpack.c.l.s4 1966171168
        %v3064 = vunpack.c.0.s8 %v3063
        %v3065 = vlaneseq
        %v3066 = vshrl.u32 %v3065, 7
        %v3067 = vsub.s32 %v3064, %v3066
        %v3068 = vrot.slane %v3061, %v3067
        %v3070 = vlaneseq
        %vm3071 = vcmp.ge.s32.totalorder %v3070, 0
        %vm3072 = vcmp.lt.s32.totalorder %v3070, 256
        %vm3073 = vmand %vm3071, %vm3072
        %3074 = vst.msk [vmem:[%s382] sm:$0x3] %vm3073, %v3068
        %s3075 = sand.u32 %s271, 1
        %s3076 = scalar_lea.sflag [#allocation4], %s3075
        %s3077 = sand.u32 %s271, 1
        %s3078 = smul.addr %s3077, 2
        %s3079 = scalar_lea.vmem [#allocation3], %s3078
        // Predicated region
        $region65: #{_forward_impl.1} parent=63 // pred_check
          %p3080 = pneg %p281
        $region66: #{_forward_impl.1} parent=63 // pred_check_branch
          %3082 = sbr.rel (%p3080) target = $region68
        $region67: #{_forward_impl.1} parent=63 // pred_region
          %s3083 = smul.u32 2, %s27
          %s3085 = ssub.s32 32, 32
          %3086 = vsyncadd %s3076, %s3085
          %s3087 = smul.addr %s3083, 16
          %s3088 = scalar_lea.hbm %s11, %s3087
          %s3090 = sshll.u32 %s3079, 4
          %s3091 = int_to_ptr.vmem [resolvable:$true] %s3090
          %3093 = dma.vmem_to_hbm [thread:$0]  %s3091, 32, %s3088, %s3076
        $region68: #{_forward_impl.1} parent=63 // pred_fallthru
          _
      $region64: #{_forward_impl.1} parent=5 // pred_fallthru
        _
      %p3094 = scmp.le.s32.totalorder 2, %s22
      // Predicated region
      $region69: #{_forward_impl.1} parent=5 // pred_check
        %p3095 = pneg %p3094
      $region70: #{_forward_impl.1} parent=5 // pred_check_branch
        %3097 = sbr.rel (%p3095) target = $region72
      $region71: #{_forward_impl.1} parent=5 // pred_region
        %s3098 = ssub.s32 %s22, 2
        // Predicated region
        $region73: #{_forward_impl.1} parent=71 // pred_check
          %p3099 = pneg %p287
        $region74: #{_forward_impl.1} parent=71 // pred_check_branch
          %3101 = sbr.rel (%p3099) target = $region76
        $region75: #{_forward_impl.1} parent=71 // pred_region
          %s3102 = sand.u32 %s272, 1
          %s3103 = scalar_lea.sflag [#allocation4], %s3102
          %s3104 = sand.u32 %s272, 1
          %s3105 = smul.addr %s3104, 2
          %s3106 = scalar_lea.vmem [#allocation3], %s3105
          %3107 = dma.done %s3103, 32
        $region76: #{_forward_impl.1} parent=71 // pred_fallthru
          _
      $region72: #{_forward_impl.1} parent=5 // pred_fallthru
        _
    $region6: #{_forward_impl.1} parent=1 // loop_footer
      %s26 = sadd.s32 1, %s22
    $region7: #{_forward_impl.1} parent=1 // loop_footer_branch
      %21 = sbr.rel target = $region3
    $region8: #{_forward_impl.1} parent=1 // loop_exit
      _
    %3108 = vsyncpa [#allocation4], 1
    %s3109 = scalar_lea.sflag [#allocation4], 1
    %3110 = vsyncpa %s3109, 1

</llo_original>
